<compile_context>
chip_gen: v5e
topology: v5e:2x2
jax: 0.10.0
libtpu: 0.0.40
codegen_flags: <defaults>
</compile_context>

<pallas_src>
import math

import jax
import jax.numpy as jnp
from jax.experimental import pallas as pl
from jax.experimental.pallas import tpu as pltpu

# ---------------- small config (consistent with the module's Config) ----------------
EMB = 64          # embedding_dims
N_HEADS = 4
N_KV_HEADS = 2
N_LAYERS = 2
FFN = 128         # ffn_dims
VOCAB = 256
EPS = 1e-6
INIT_STD = 0.02
HEAD_DIM = EMB // N_HEADS
DIM_HALF = HEAD_DIM // 2
KV_DIM = N_KV_HEADS * HEAD_DIM
QKV_OUT = EMB + 2 * KV_DIM           # 128 -> one full MXU-width matmul
REP = N_HEADS // N_KV_HEADS

INV_FREQ = 1.0 / (10000.0 ** (2.0 * jnp.arange(DIM_HALF, dtype=jnp.float32) / HEAD_DIM))


# ---------------- in-kernel helpers (traced inside the fused kernel) ----------------
def _rmsnorm(x, w):
    # x: (T, C) f32, w: (1, C) f32
    ms = jnp.mean(x * x, axis=-1, keepdims=True)
    return x * jax.lax.rsqrt(ms + EPS) * w


def _rope(x, n_heads, sin, cos):
    # x: (T, n_heads*HEAD_DIM) f32 ; sin/cos: (T, DIM_HALF) f32
    # Per-head half-split rotation done with static lane slices (no reshape/transpose).
    parts = []
    for h in range(n_heads):
        x1 = x[:, h * HEAD_DIM:h * HEAD_DIM + DIM_HALF]
        x2 = x[:, h * HEAD_DIM + DIM_HALF:(h + 1) * HEAD_DIM]
        parts.append(x1 * cos - x2 * sin)
        parts.append(x1 * sin + x2 * cos)
    return jnp.concatenate(parts, axis=-1)


# ---------------- fused whole-model kernel (one grid step = one batch element) ----------------
def _llama_fused_kernel(
    x_ref, sin_ref, cos_ref,
    attn_norm_ref, wqkv_ref, wo_ref,
    mlp_norm_ref, wgu_ref, bgu_ref, wd_ref, bd_ref,
    fnorm_ref, lmhead_ref,
    o_ref,
):
    x = x_ref[0]                       # (T, EMB) f32
    T = x.shape[0]
    sin = sin_ref[...]                 # (T, DIM_HALF)
    cos = cos_ref[...]
    scale = 1.0 / math.sqrt(HEAD_DIM)

    row = jax.lax.broadcasted_iota(jnp.int32, (T, T), 0)
    col = jax.lax.broadcasted_iota(jnp.int32, (T, T), 1)
    causal = col <= row

    for l in range(N_LAYERS):
        # ---------------- attention block ----------------
        h = _rmsnorm(x, attn_norm_ref[l])                              # (T, EMB) f32
        qkv = jnp.dot(h.astype(jnp.bfloat16), wqkv_ref[l],
                      preferred_element_type=jnp.float32)              # (T, 128) f32
        q = qkv[:, :EMB]
        k = qkv[:, EMB:EMB + KV_DIM]
        v = qkv[:, EMB + KV_DIM:]

        q = _rope(q, N_HEADS, sin, cos)
        k = _rope(k, N_KV_HEADS, sin, cos)

        q16 = q.astype(jnp.bfloat16)
        k16 = k.astype(jnp.bfloat16)
        v16 = v.astype(jnp.bfloat16)

        heads_out = []
        for hd in range(N_HEADS):
            g = hd // REP                                              # GQA: no K/V repeat
            qh = q16[:, hd * HEAD_DIM:(hd + 1) * HEAD_DIM]             # (T, D)
            kh = k16[:, g * HEAD_DIM:(g + 1) * HEAD_DIM]
            vh = v16[:, g * HEAD_DIM:(g + 1) * HEAD_DIM]
            s = jnp.dot(qh, kh.T, preferred_element_type=jnp.float32) * scale
            s = jnp.where(causal, s, -1e30)
            m = jnp.max(s, axis=-1, keepdims=True)
            p = jnp.exp(s - m)                                         # f32 softmax math
            inv = pl.reciprocal(jnp.sum(p, axis=-1, keepdims=True), approx=True)
            p = p * inv
            heads_out.append(jnp.dot(p.astype(jnp.bfloat16), vh,
                                     preferred_element_type=jnp.float32))
        attn = jnp.concatenate(heads_out, axis=-1)                     # (T, EMB) f32, lane-dense

        o = jnp.dot(attn.astype(jnp.bfloat16), wo_ref[l],
                    preferred_element_type=jnp.float32)
        x = x + o                                                      # resid_dropout = identity

        # ---------------- MLP block ----------------
        h = _rmsnorm(x, mlp_norm_ref[l])
        gu = jnp.dot(h.astype(jnp.bfloat16), wgu_ref[l],
                     preferred_element_type=jnp.float32) + bgu_ref[l]  # (T, 2*FFN)
        gt = gu[:, :FFN]
        up = gu[:, FFN:]
        hidden = gt * jax.nn.sigmoid(gt) * up                          # SiLU(gate) * up, f32
        d = jnp.dot(hidden.astype(jnp.bfloat16), wd_ref[l],
                    preferred_element_type=jnp.float32) + bd_ref[l]
        x = x + d                                                      # ffn_dropout = identity

    # ---------------- final norm + tied lm_head ----------------
    xf = _rmsnorm(x, fnorm_ref[0])
    logits = jnp.dot(xf.astype(jnp.bfloat16), lmhead_ref[...],
                     preferred_element_type=jnp.float32)               # (T, VOCAB)
    o_ref[0] = logits


# ---------------- wrapper ----------------
def llama_forward(params, input_ids):
    B, T = input_ids.shape
    x = jnp.take(params["tok_emb"], input_ids, axis=0)                 # (B, T, EMB) f32 gather

    pos = jnp.arange(T, dtype=jnp.float32)[:, None]
    theta = pos * INV_FREQ[None, :]                                    # (T, DIM_HALF)
    sin = jnp.sin(theta)
    cos = jnp.cos(theta)

    def full(shape):
        return pl.BlockSpec(shape, lambda b, _n=len(shape): (0,) * _n)

    in_specs = [
        pl.BlockSpec((1, T, EMB), lambda b: (b, 0, 0)),                # x (per batch element)
        full((T, DIM_HALF)),                                           # sin
        full((T, DIM_HALF)),                                           # cos
        full((N_LAYERS, 1, EMB)),                                      # attn_norm
        full((N_LAYERS, EMB, QKV_OUT)),                                # wqkv (bf16)
        full((N_LAYERS, EMB, EMB)),                                    # wo   (bf16)
        full((N_LAYERS, 1, EMB)),                                      # mlp_norm
        full((N_LAYERS, EMB, 2 * FFN)),                                # wgu  (bf16)
        full((N_LAYERS, 1, 2 * FFN)),                                  # bgu
        full((N_LAYERS, FFN, EMB)),                                    # wd   (bf16)
        full((N_LAYERS, 1, EMB)),                                      # bd
        full((1, 1, EMB)),                                             # fnorm
        full((EMB, VOCAB)),                                            # lm_head (pre-transposed, bf16)
    ]

    return pl.pallas_call(
        _llama_fused_kernel,
        out_shape=jax.ShapeDtypeStruct((B, T, VOCAB), jnp.float32),
        grid=(B,),
        in_specs=in_specs,
        out_specs=pl.BlockSpec((1, T, VOCAB), lambda b: (b, 0, 0)),
        compiler_params=pltpu.CompilerParams(
            dimension_semantics=("parallel",),                         # v7x: shard batch over 2 TCs
        ),
    )(x, sin, cos,
      params["attn_norm"], params["wqkv"], params["wo"],
      params["mlp_norm"], params["wgu"], params["bgu"],
      params["wd"], params["bd"],
      params["fnorm"], params["lm_head_t"])


# ---------------- parameter init (matches PyTorch module init semantics) ----------------
def init_params(key):
    ks = iter(jax.random.split(key, 1 + 7 * N_LAYERS))

    def nrm(k, shape):
        return INIT_STD * jax.random.normal(k, shape, jnp.float32)

    # nn.Embedding default init ~ N(0, 1); lm_head weight is tied to it.
    tok_emb = jax.random.normal(next(ks), (VOCAB, EMB), jnp.float32)

    wqkv, wo, wgu, wd = [], [], [], []
    for _ in range(N_LAYERS):
        wq = nrm(next(ks), (EMB, EMB))
        wk = nrm(next(ks), (EMB, KV_DIM))
        wv = nrm(next(ks), (EMB, KV_DIM))
        wqkv.append(jnp.concatenate([wq, wk, wv], axis=1))             # fused QKV weight
        wo.append(nrm(next(ks), (EMB, EMB)))
        wg = nrm(next(ks), (EMB, FFN))
        wu = nrm(next(ks), (EMB, FFN))
        wgu.append(jnp.concatenate([wg, wu], axis=1))                  # fused gate/up weight
        wd.append(nrm(next(ks), (FFN, EMB)))

    return {
        "tok_emb": tok_emb,                                            # f32, embedding lookup
        "lm_head_t": tok_emb.T.astype(jnp.bfloat16),                   # tied, pre-transposed for MXU
        "attn_norm": jnp.ones((N_LAYERS, 1, EMB), jnp.float32),
        "wqkv": jnp.stack(wqkv).astype(jnp.bfloat16),                  # (L, EMB, 128)
        "wo": jnp.stack(wo).astype(jnp.bfloat16),                      # (L, EMB, EMB)
        "mlp_norm": jnp.ones((N_LAYERS, 1, EMB), jnp.float32),
        "wgu": jnp.stack(wgu).astype(jnp.bfloat16),                    # (L, EMB, 256)
        "bgu": jnp.zeros((N_LAYERS, 1, 2 * FFN), jnp.float32),
        "wd": jnp.stack(wd).astype(jnp.bfloat16),                      # (L, FFN, EMB)
        "bd": jnp.zeros((N_LAYERS, 1, EMB), jnp.float32),
        "fnorm": jnp.ones((1, 1, EMB), jnp.float32),
    }


if __name__ == "__main__":
    key = jax.random.PRNGKey(0)
    pkey, ikey = jax.random.split(key)
    params = init_params(pkey)

    B, T = 2, 8
    input_ids = jax.random.randint(ikey, (B, T), 0, VOCAB, dtype=jnp.int32)

    logits = jax.jit(llama_forward)(params, input_ids)
    jax.block_until_ready(logits)
    assert logits.shape == (B, T, VOCAB)
    assert logits.dtype == jnp.float32
    print("KERNEL_OK")
</pallas_src>

<mosaic_0001>
module attributes {stable_mosaic.version = 11 : i64} {
  func.func @_llama_fused_kernel(%arg0: i32, %arg1: memref<1x8x64xf32, #tpu.memory_space<vmem>>, %arg2: memref<8x8xf32, #tpu.memory_space<vmem>>, %arg3: memref<8x8xf32, #tpu.memory_space<vmem>>, %arg4: memref<2x1x64xf32, #tpu.memory_space<vmem>>, %arg5: memref<2x64x128xbf16, #tpu.memory_space<vmem>>, %arg6: memref<2x64x64xbf16, #tpu.memory_space<vmem>>, %arg7: memref<2x1x64xf32, #tpu.memory_space<vmem>>, %arg8: memref<2x64x256xbf16, #tpu.memory_space<vmem>>, %arg9: memref<2x1x256xf32, #tpu.memory_space<vmem>>, %arg10: memref<2x128x64xbf16, #tpu.memory_space<vmem>>, %arg11: memref<2x1x64xf32, #tpu.memory_space<vmem>>, %arg12: memref<1x1x64xf32, #tpu.memory_space<vmem>>, %arg13: memref<64x256xbf16, #tpu.memory_space<vmem>>, %arg14: memref<1x8x256xf32, #tpu.memory_space<vmem>>) attributes {dimension_semantics = [#tpu.dimension_semantics<parallel>], iteration_bounds = array<i64: 2>, scalar_prefetch = 0 : i64, scratch_operands = 0 : i64, tpu.core_type = #tpu.core_type<tc>, window_params = [{transform_indices = @transform_0, window_bounds = array<i64: 1, 8, 64>}, {pipeline_mode = #tpu.pipeline_mode<synchronous>, transform_indices = @transform_1, window_bounds = array<i64: 8, 8>}, {pipeline_mode = #tpu.pipeline_mode<synchronous>, transform_indices = @transform_2, window_bounds = array<i64: 8, 8>}, {pipeline_mode = #tpu.pipeline_mode<synchronous>, transform_indices = @transform_3, window_bounds = array<i64: 2, 1, 64>}, {pipeline_mode = #tpu.pipeline_mode<synchronous>, transform_indices = @transform_4, window_bounds = array<i64: 2, 64, 128>}, {pipeline_mode = #tpu.pipeline_mode<synchronous>, transform_indices = @transform_5, window_bounds = array<i64: 2, 64, 64>}, {pipeline_mode = #tpu.pipeline_mode<synchronous>, transform_indices = @transform_6, window_bounds = array<i64: 2, 1, 64>}, {pipeline_mode = #tpu.pipeline_mode<synchronous>, transform_indices = @transform_7, window_bounds = array<i64: 2, 64, 256>}, {pipeline_mode = #tpu.pipeline_mode<synchronous>, transform_indices = @transform_8, window_bounds = array<i64: 2, 1, 256>}, {pipeline_mode = #tpu.pipeline_mode<synchronous>, transform_indices = @transform_9, window_bounds = array<i64: 2, 128, 64>}, {pipeline_mode = #tpu.pipeline_mode<synchronous>, transform_indices = @transform_10, window_bounds = array<i64: 2, 1, 64>}, {pipeline_mode = #tpu.pipeline_mode<synchronous>, transform_indices = @transform_11, window_bounds = array<i64: 1, 1, 64>}, {pipeline_mode = #tpu.pipeline_mode<synchronous>, transform_indices = @transform_12, window_bounds = array<i64: 64, 256>}, {transform_indices = @transform_13, window_bounds = array<i64: 1, 8, 256>}]} {
    %c0 = arith.constant 0 : index
    %c0_0 = arith.constant 0 : index
    %c0_1 = arith.constant 0 : index
    %0 = vector.load %arg1[%c0, %c0_0, %c0_1] : memref<1x8x64xf32, #tpu.memory_space<vmem>>, vector<1x8x64xf32>
    %1 = vector.shape_cast %0 : vector<1x8x64xf32> to vector<8x64xf32>
    %c0_2 = arith.constant 0 : index
    %c0_3 = arith.constant 0 : index
    %2 = vector.load %arg2[%c0_2, %c0_3] : memref<8x8xf32, #tpu.memory_space<vmem>>, vector<8x8xf32>
    %c0_4 = arith.constant 0 : index
    %c0_5 = arith.constant 0 : index
    %3 = vector.load %arg3[%c0_4, %c0_5] : memref<8x8xf32, #tpu.memory_space<vmem>>, vector<8x8xf32>
    %4 = tpu.iota {dimensions = array<i32: 0>} : vector<8x8xi32>
    %5 = tpu.iota {dimensions = array<i32: 1>} : vector<8x8xi32>
    %6 = arith.cmpi sle, %5, %4 : vector<8x8xi32>
    %c0_6 = arith.constant 0 : index
    %c0_7 = arith.constant 0 : index
    %c0_8 = arith.constant 0 : index
    %7 = vector.load %arg4[%c0_6, %c0_7, %c0_8] : memref<2x1x64xf32, #tpu.memory_space<vmem>>, vector<1x1x64xf32>
    %8 = vector.shape_cast %7 : vector<1x1x64xf32> to vector<1x64xf32>
    %9 = arith.mulf %1, %1 : vector<8x64xf32>
    %cst = arith.constant dense<0.000000e+00> : vector<8xf32>
    %10 = vector.multi_reduction <add>, %9, %cst [1] : vector<8x64xf32> to vector<8xf32>
    %11 = vector.shape_cast %10 : vector<8xf32> to vector<8x1xf32>
    %cst_9 = arith.constant 6.400000e+01 : f32
    %12 = vector.broadcast %cst_9 : f32 to vector<8x1xf32>
    %13 = arith.divf %11, %12 : vector<8x1xf32>
    %cst_10 = arith.constant 9.99999997E-7 : f32
    %14 = vector.broadcast %cst_10 : f32 to vector<8x1xf32>
    %15 = arith.addf %13, %14 : vector<8x1xf32>
    %16 = math.rsqrt %15 : vector<8x1xf32>
    %17 = vector.broadcast %16 : vector<8x1xf32> to vector<8x64xf32>
    %18 = arith.mulf %1, %17 : vector<8x64xf32>
    %19 = vector.broadcast %8 : vector<1x64xf32> to vector<8x64xf32>
    %20 = arith.mulf %18, %19 : vector<8x64xf32>
    %21 = arith.truncf %20 : vector<8x64xf32> to vector<8x64xbf16>
    %c0_11 = arith.constant 0 : index
    %c0_12 = arith.constant 0 : index
    %c0_13 = arith.constant 0 : index
    %22 = vector.load %arg5[%c0_11, %c0_12, %c0_13] : memref<2x64x128xbf16, #tpu.memory_space<vmem>>, vector<1x64x128xbf16>
    %23 = vector.shape_cast %22 : vector<1x64x128xbf16> to vector<64x128xbf16>
    %cst_14 = arith.constant dense<0.000000e+00> : vector<8x128xf32>
    %24 = tpu.matmul %21, %23, %cst_14 {dimension_numbers = #tpu.dot_dimension_numbers<[1], [0], [0], [1], [0, 0, 1, 1], [], []>} : vector<8x64xbf16>, vector<64x128xbf16>, vector<8x128xf32> -> vector<8x128xf32>
    %25 = vector.extract_strided_slice %24 {offsets = [0, 0], sizes = [8, 64], strides = [1, 1]} : vector<8x128xf32> to vector<8x64xf32>
    %26 = vector.extract_strided_slice %24 {offsets = [0, 64], sizes = [8, 32], strides = [1, 1]} : vector<8x128xf32> to vector<8x32xf32>
    %27 = vector.extract_strided_slice %24 {offsets = [0, 96], sizes = [8, 32], strides = [1, 1]} : vector<8x128xf32> to vector<8x32xf32>
    %28 = vector.extract_strided_slice %25 {offsets = [0, 0], sizes = [8, 8], strides = [1, 1]} : vector<8x64xf32> to vector<8x8xf32>
    %29 = vector.extract_strided_slice %25 {offsets = [0, 8], sizes = [8, 8], strides = [1, 1]} : vector<8x64xf32> to vector<8x8xf32>
    %30 = arith.mulf %28, %3 : vector<8x8xf32>
    %31 = arith.mulf %29, %2 : vector<8x8xf32>
    %32 = arith.subf %30, %31 : vector<8x8xf32>
    %33 = arith.mulf %28, %2 : vector<8x8xf32>
    %34 = arith.mulf %29, %3 : vector<8x8xf32>
    %35 = arith.addf %33, %34 : vector<8x8xf32>
    %36 = vector.extract_strided_slice %25 {offsets = [0, 16], sizes = [8, 8], strides = [1, 1]} : vector<8x64xf32> to vector<8x8xf32>
    %37 = vector.extract_strided_slice %25 {offsets = [0, 24], sizes = [8, 8], strides = [1, 1]} : vector<8x64xf32> to vector<8x8xf32>
    %38 = arith.mulf %36, %3 : vector<8x8xf32>
    %39 = arith.mulf %37, %2 : vector<8x8xf32>
    %40 = arith.subf %38, %39 : vector<8x8xf32>
    %41 = arith.mulf %36, %2 : vector<8x8xf32>
    %42 = arith.mulf %37, %3 : vector<8x8xf32>
    %43 = arith.addf %41, %42 : vector<8x8xf32>
    %44 = vector.extract_strided_slice %25 {offsets = [0, 32], sizes = [8, 8], strides = [1, 1]} : vector<8x64xf32> to vector<8x8xf32>
    %45 = vector.extract_strided_slice %25 {offsets = [0, 40], sizes = [8, 8], strides = [1, 1]} : vector<8x64xf32> to vector<8x8xf32>
    %46 = arith.mulf %44, %3 : vector<8x8xf32>
    %47 = arith.mulf %45, %2 : vector<8x8xf32>
    %48 = arith.subf %46, %47 : vector<8x8xf32>
    %49 = arith.mulf %44, %2 : vector<8x8xf32>
    %50 = arith.mulf %45, %3 : vector<8x8xf32>
    %51 = arith.addf %49, %50 : vector<8x8xf32>
    %52 = vector.extract_strided_slice %25 {offsets = [0, 48], sizes = [8, 8], strides = [1, 1]} : vector<8x64xf32> to vector<8x8xf32>
    %53 = vector.extract_strided_slice %25 {offsets = [0, 56], sizes = [8, 8], strides = [1, 1]} : vector<8x64xf32> to vector<8x8xf32>
    %54 = arith.mulf %52, %3 : vector<8x8xf32>
    %55 = arith.mulf %53, %2 : vector<8x8xf32>
    %56 = arith.subf %54, %55 : vector<8x8xf32>
    %57 = arith.mulf %52, %2 : vector<8x8xf32>
    %58 = arith.mulf %53, %3 : vector<8x8xf32>
    %59 = arith.addf %57, %58 : vector<8x8xf32>
    %60 = tpu.concatenate %32, %35, %40, %43, %48, %51, %56, %59 in 1 : vector<8x8xf32>, vector<8x8xf32>, vector<8x8xf32>, vector<8x8xf32>, vector<8x8xf32>, vector<8x8xf32>, vector<8x8xf32>, vector<8x8xf32> -> vector<8x64xf32>
    %61 = vector.extract_strided_slice %26 {offsets = [0, 0], sizes = [8, 8], strides = [1, 1]} : vector<8x32xf32> to vector<8x8xf32>
    %62 = vector.extract_strided_slice %26 {offsets = [0, 8], sizes = [8, 8], strides = [1, 1]} : vector<8x32xf32> to vector<8x8xf32>
    %63 = arith.mulf %61, %3 : vector<8x8xf32>
    %64 = arith.mulf %62, %2 : vector<8x8xf32>
    %65 = arith.subf %63, %64 : vector<8x8xf32>
    %66 = arith.mulf %61, %2 : vector<8x8xf32>
    %67 = arith.mulf %62, %3 : vector<8x8xf32>
    %68 = arith.addf %66, %67 : vector<8x8xf32>
    %69 = vector.extract_strided_slice %26 {offsets = [0, 16], sizes = [8, 8], strides = [1, 1]} : vector<8x32xf32> to vector<8x8xf32>
    %70 = vector.extract_strided_slice %26 {offsets = [0, 24], sizes = [8, 8], strides = [1, 1]} : vector<8x32xf32> to vector<8x8xf32>
    %71 = arith.mulf %69, %3 : vector<8x8xf32>
    %72 = arith.mulf %70, %2 : vector<8x8xf32>
    %73 = arith.subf %71, %72 : vector<8x8xf32>
    %74 = arith.mulf %69, %2 : vector<8x8xf32>
    %75 = arith.mulf %70, %3 : vector<8x8xf32>
    %76 = arith.addf %74, %75 : vector<8x8xf32>
    %77 = tpu.concatenate %65, %68, %73, %76 in 1 : vector<8x8xf32>, vector<8x8xf32>, vector<8x8xf32>, vector<8x8xf32> -> vector<8x32xf32>
    %78 = arith.truncf %60 : vector<8x64xf32> to vector<8x64xbf16>
    %79 = arith.truncf %77 : vector<8x32xf32> to vector<8x32xbf16>
    %80 = arith.truncf %27 : vector<8x32xf32> to vector<8x32xbf16>
    %81 = vector.extract_strided_slice %78 {offsets = [0, 0], sizes = [8, 16], strides = [1, 1]} : vector<8x64xbf16> to vector<8x16xbf16>
    %82 = vector.extract_strided_slice %79 {offsets = [0, 0], sizes = [8, 16], strides = [1, 1]} : vector<8x32xbf16> to vector<8x16xbf16>
    %83 = vector.extract_strided_slice %80 {offsets = [0, 0], sizes = [8, 16], strides = [1, 1]} : vector<8x32xbf16> to vector<8x16xbf16>
    %84 = tpu.transpose %82, [1, 0] : vector<8x16xbf16> -> vector<16x8xbf16>
    %cst_15 = arith.constant dense<0.000000e+00> : vector<8x8xf32>
    %85 = tpu.matmul %81, %84, %cst_15 {dimension_numbers = #tpu.dot_dimension_numbers<[1], [0], [0], [1], [0, 0, 1, 1], [], []>} : vector<8x16xbf16>, vector<16x8xbf16>, vector<8x8xf32> -> vector<8x8xf32>
    %cst_16 = arith.constant 2.500000e-01 : f32
    %86 = vector.broadcast %cst_16 : f32 to vector<8x8xf32>
    %87 = arith.mulf %85, %86 : vector<8x8xf32>
    %cst_17 = arith.constant -1.000000e+30 : f32
    %88 = vector.broadcast %cst_17 : f32 to vector<8x8xf32>
    %89 = arith.select %6, %87, %88 : vector<8x8xi1>, vector<8x8xf32>
    %cst_18 = arith.constant dense<0xFF800000> : vector<8xf32>
    %90 = vector.multi_reduction <maximumf>, %89, %cst_18 [1] : vector<8x8xf32> to vector<8xf32>
    %91 = vector.shape_cast %90 : vector<8xf32> to vector<8x1xf32>
    %92 = vector.broadcast %91 : vector<8x1xf32> to vector<8x8xf32>
    %93 = arith.subf %89, %92 : vector<8x8xf32>
    %94 = math.exp %93 : vector<8x8xf32>
    %cst_19 = arith.constant dense<0.000000e+00> : vector<8xf32>
    %95 = vector.multi_reduction <add>, %94, %cst_19 [1] : vector<8x8xf32> to vector<8xf32>
    %96 = vector.shape_cast %95 : vector<8xf32> to vector<8x1xf32>
    %97 = tpu.reciprocal %96 {approx = true} : vector<8x1xf32> -> vector<8x1xf32>
    %98 = vector.broadcast %97 : vector<8x1xf32> to vector<8x8xf32>
    %99 = arith.mulf %94, %98 : vector<8x8xf32>
    %100 = arith.truncf %99 : vector<8x8xf32> to vector<8x8xbf16>
    %cst_20 = arith.constant dense<0.000000e+00> : vector<8x16xf32>
    %101 = tpu.matmul %100, %83, %cst_20 {dimension_numbers = #tpu.dot_dimension_numbers<[1], [0], [0], [1], [0, 0, 1, 1], [], []>} : vector<8x8xbf16>, vector<8x16xbf16>, vector<8x16xf32> -> vector<8x16xf32>
    %102 = vector.extract_strided_slice %78 {offsets = [0, 16], sizes = [8, 16], strides = [1, 1]} : vector<8x64xbf16> to vector<8x16xbf16>
    %103 = vector.extract_strided_slice %79 {offsets = [0, 0], sizes = [8, 16], strides = [1, 1]} : vector<8x32xbf16> to vector<8x16xbf16>
    %104 = vector.extract_strided_slice %80 {offsets = [0, 0], sizes = [8, 16], strides = [1, 1]} : vector<8x32xbf16> to vector<8x16xbf16>
    %105 = tpu.transpose %103, [1, 0] : vector<8x16xbf16> -> vector<16x8xbf16>
    %cst_21 = arith.constant dense<0.000000e+00> : vector<8x8xf32>
    %106 = tpu.matmul %102, %105, %cst_21 {dimension_numbers = #tpu.dot_dimension_numbers<[1], [0], [0], [1], [0, 0, 1, 1], [], []>} : vector<8x16xbf16>, vector<16x8xbf16>, vector<8x8xf32> -> vector<8x8xf32>
    %cst_22 = arith.constant 2.500000e-01 : f32
    %107 = vector.broadcast %cst_22 : f32 to vector<8x8xf32>
    %108 = arith.mulf %106, %107 : vector<8x8xf32>
    %cst_23 = arith.constant -1.000000e+30 : f32
    %109 = vector.broadcast %cst_23 : f32 to vector<8x8xf32>
    %110 = arith.select %6, %108, %109 : vector<8x8xi1>, vector<8x8xf32>
    %cst_24 = arith.constant dense<0xFF800000> : vector<8xf32>
    %111 = vector.multi_reduction <maximumf>, %110, %cst_24 [1] : vector<8x8xf32> to vector<8xf32>
    %112 = vector.shape_cast %111 : vector<8xf32> to vector<8x1xf32>
    %113 = vector.broadcast %112 : vector<8x1xf32> to vector<8x8xf32>
    %114 = arith.subf %110, %113 : vector<8x8xf32>
    %115 = math.exp %114 : vector<8x8xf32>
    %cst_25 = arith.constant dense<0.000000e+00> : vector<8xf32>
    %116 = vector.multi_reduction <add>, %115, %cst_25 [1] : vector<8x8xf32> to vector<8xf32>
    %117 = vector.shape_cast %116 : vector<8xf32> to vector<8x1xf32>
    %118 = tpu.reciprocal %117 {approx = true} : vector<8x1xf32> -> vector<8x1xf32>
    %119 = vector.broadcast %118 : vector<8x1xf32> to vector<8x8xf32>
    %120 = arith.mulf %115, %119 : vector<8x8xf32>
    %121 = arith.truncf %120 : vector<8x8xf32> to vector<8x8xbf16>
    %cst_26 = arith.constant dense<0.000000e+00> : vector<8x16xf32>
    %122 = tpu.matmul %121, %104, %cst_26 {dimension_numbers = #tpu.dot_dimension_numbers<[1], [0], [0], [1], [0, 0, 1, 1], [], []>} : vector<8x8xbf16>, vector<8x16xbf16>, vector<8x16xf32> -> vector<8x16xf32>
    %123 = vector.extract_strided_slice %78 {offsets = [0, 32], sizes = [8, 16], strides = [1, 1]} : vector<8x64xbf16> to vector<8x16xbf16>
    %124 = vector.extract_strided_slice %79 {offsets = [0, 16], sizes = [8, 16], strides = [1, 1]} : vector<8x32xbf16> to vector<8x16xbf16>
    %125 = vector.extract_strided_slice %80 {offsets = [0, 16], sizes = [8, 16], strides = [1, 1]} : vector<8x32xbf16> to vector<8x16xbf16>
    %126 = tpu.transpose %124, [1, 0] : vector<8x16xbf16> -> vector<16x8xbf16>
    %cst_27 = arith.constant dense<0.000000e+00> : vector<8x8xf32>
    %127 = tpu.matmul %123, %126, %cst_27 {dimension_numbers = #tpu.dot_dimension_numbers<[1], [0], [0], [1], [0, 0, 1, 1], [], []>} : vector<8x16xbf16>, vector<16x8xbf16>, vector<8x8xf32> -> vector<8x8xf32>
    %cst_28 = arith.constant 2.500000e-01 : f32
    %128 = vector.broadcast %cst_28 : f32 to vector<8x8xf32>
    %129 = arith.mulf %127, %128 : vector<8x8xf32>
    %cst_29 = arith.constant -1.000000e+30 : f32
    %130 = vector.broadcast %cst_29 : f32 to vector<8x8xf32>
    %131 = arith.select %6, %129, %130 : vector<8x8xi1>, vector<8x8xf32>
    %cst_30 = arith.constant dense<0xFF800000> : vector<8xf32>
    %132 = vector.multi_reduction <maximumf>, %131, %cst_30 [1] : vector<8x8xf32> to vector<8xf32>
    %133 = vector.shape_cast %132 : vector<8xf32> to vector<8x1xf32>
    %134 = vector.broadcast %133 : vector<8x1xf32> to vector<8x8xf32>
    %135 = arith.subf %131, %134 : vector<8x8xf32>
    %136 = math.exp %135 : vector<8x8xf32>
    %cst_31 = arith.constant dense<0.000000e+00> : vector<8xf32>
    %137 = vector.multi_reduction <add>, %136, %cst_31 [1] : vector<8x8xf32> to vector<8xf32>
    %138 = vector.shape_cast %137 : vector<8xf32> to vector<8x1xf32>
    %139 = tpu.reciprocal %138 {approx = true} : vector<8x1xf32> -> vector<8x1xf32>
    %140 = vector.broadcast %139 : vector<8x1xf32> to vector<8x8xf32>
    %141 = arith.mulf %136, %140 : vector<8x8xf32>
    %142 = arith.truncf %141 : vector<8x8xf32> to vector<8x8xbf16>
    %cst_32 = arith.constant dense<0.000000e+00> : vector<8x16xf32>
    %143 = tpu.matmul %142, %125, %cst_32 {dimension_numbers = #tpu.dot_dimension_numbers<[1], [0], [0], [1], [0, 0, 1, 1], [], []>} : vector<8x8xbf16>, vector<8x16xbf16>, vector<8x16xf32> -> vector<8x16xf32>
    %144 = vector.extract_strided_slice %78 {offsets = [0, 48], sizes = [8, 16], strides = [1, 1]} : vector<8x64xbf16> to vector<8x16xbf16>
    %145 = vector.extract_strided_slice %79 {offsets = [0, 16], sizes = [8, 16], strides = [1, 1]} : vector<8x32xbf16> to vector<8x16xbf16>
    %146 = vector.extract_strided_slice %80 {offsets = [0, 16], sizes = [8, 16], strides = [1, 1]} : vector<8x32xbf16> to vector<8x16xbf16>
    %147 = tpu.transpose %145, [1, 0] : vector<8x16xbf16> -> vector<16x8xbf16>
    %cst_33 = arith.constant dense<0.000000e+00> : vector<8x8xf32>
    %148 = tpu.matmul %144, %147, %cst_33 {dimension_numbers = #tpu.dot_dimension_numbers<[1], [0], [0], [1], [0, 0, 1, 1], [], []>} : vector<8x16xbf16>, vector<16x8xbf16>, vector<8x8xf32> -> vector<8x8xf32>
    %cst_34 = arith.constant 2.500000e-01 : f32
    %149 = vector.broadcast %cst_34 : f32 to vector<8x8xf32>
    %150 = arith.mulf %148, %149 : vector<8x8xf32>
    %cst_35 = arith.constant -1.000000e+30 : f32
    %151 = vector.broadcast %cst_35 : f32 to vector<8x8xf32>
    %152 = arith.select %6, %150, %151 : vector<8x8xi1>, vector<8x8xf32>
    %cst_36 = arith.constant dense<0xFF800000> : vector<8xf32>
    %153 = vector.multi_reduction <maximumf>, %152, %cst_36 [1] : vector<8x8xf32> to vector<8xf32>
    %154 = vector.shape_cast %153 : vector<8xf32> to vector<8x1xf32>
    %155 = vector.broadcast %154 : vector<8x1xf32> to vector<8x8xf32>
    %156 = arith.subf %152, %155 : vector<8x8xf32>
    %157 = math.exp %156 : vector<8x8xf32>
    %cst_37 = arith.constant dense<0.000000e+00> : vector<8xf32>
    %158 = vector.multi_reduction <add>, %157, %cst_37 [1] : vector<8x8xf32> to vector<8xf32>
    %159 = vector.shape_cast %158 : vector<8xf32> to vector<8x1xf32>
    %160 = tpu.reciprocal %159 {approx = true} : vector<8x1xf32> -> vector<8x1xf32>
    %161 = vector.broadcast %160 : vector<8x1xf32> to vector<8x8xf32>
    %162 = arith.mulf %157, %161 : vector<8x8xf32>
    %163 = arith.truncf %162 : vector<8x8xf32> to vector<8x8xbf16>
    %cst_38 = arith.constant dense<0.000000e+00> : vector<8x16xf32>
    %164 = tpu.matmul %163, %146, %cst_38 {dimension_numbers = #tpu.dot_dimension_numbers<[1], [0], [0], [1], [0, 0, 1, 1], [], []>} : vector<8x8xbf16>, vector<8x16xbf16>, vector<8x16xf32> -> vector<8x16xf32>
    %165 = tpu.concatenate %101, %122, %143, %164 in 1 : vector<8x16xf32>, vector<8x16xf32>, vector<8x16xf32>, vector<8x16xf32> -> vector<8x64xf32>
    %166 = arith.truncf %165 : vector<8x64xf32> to vector<8x64xbf16>
    %c0_39 = arith.constant 0 : index
    %c0_40 = arith.constant 0 : index
    %c0_41 = arith.constant 0 : index
    %167 = vector.load %arg6[%c0_39, %c0_40, %c0_41] : memref<2x64x64xbf16, #tpu.memory_space<vmem>>, vector<1x64x64xbf16>
    %168 = vector.shape_cast %167 : vector<1x64x64xbf16> to vector<64x64xbf16>
    %cst_42 = arith.constant dense<0.000000e+00> : vector<8x64xf32>
    %169 = tpu.matmul %166, %168, %cst_42 {dimension_numbers = #tpu.dot_dimension_numbers<[1], [0], [0], [1], [0, 0, 1, 1], [], []>} : vector<8x64xbf16>, vector<64x64xbf16>, vector<8x64xf32> -> vector<8x64xf32>
    %170 = arith.addf %1, %169 : vector<8x64xf32>
    %c0_43 = arith.constant 0 : index
    %c0_44 = arith.constant 0 : index
    %c0_45 = arith.constant 0 : index
    %171 = vector.load %arg7[%c0_43, %c0_44, %c0_45] : memref<2x1x64xf32, #tpu.memory_space<vmem>>, vector<1x1x64xf32>
    %172 = vector.shape_cast %171 : vector<1x1x64xf32> to vector<1x64xf32>
    %173 = arith.mulf %170, %170 : vector<8x64xf32>
    %cst_46 = arith.constant dense<0.000000e+00> : vector<8xf32>
    %174 = vector.multi_reduction <add>, %173, %cst_46 [1] : vector<8x64xf32> to vector<8xf32>
    %175 = vector.shape_cast %174 : vector<8xf32> to vector<8x1xf32>
    %cst_47 = arith.constant 6.400000e+01 : f32
    %176 = vector.broadcast %cst_47 : f32 to vector<8x1xf32>
    %177 = arith.divf %175, %176 : vector<8x1xf32>
    %cst_48 = arith.constant 9.99999997E-7 : f32
    %178 = vector.broadcast %cst_48 : f32 to vector<8x1xf32>
    %179 = arith.addf %177, %178 : vector<8x1xf32>
    %180 = math.rsqrt %179 : vector<8x1xf32>
    %181 = vector.broadcast %180 : vector<8x1xf32> to vector<8x64xf32>
    %182 = arith.mulf %170, %181 : vector<8x64xf32>
    %183 = vector.broadcast %172 : vector<1x64xf32> to vector<8x64xf32>
    %184 = arith.mulf %182, %183 : vector<8x64xf32>
    %185 = arith.truncf %184 : vector<8x64xf32> to vector<8x64xbf16>
    %c0_49 = arith.constant 0 : index
    %c0_50 = arith.constant 0 : index
    %c0_51 = arith.constant 0 : index
    %186 = vector.load %arg8[%c0_49, %c0_50, %c0_51] : memref<2x64x256xbf16, #tpu.memory_space<vmem>>, vector<1x64x256xbf16>
    %187 = vector.shape_cast %186 : vector<1x64x256xbf16> to vector<64x256xbf16>
    %cst_52 = arith.constant dense<0.000000e+00> : vector<8x256xf32>
    %188 = tpu.matmul %185, %187, %cst_52 {dimension_numbers = #tpu.dot_dimension_numbers<[1], [0], [0], [1], [0, 0, 1, 1], [], []>} : vector<8x64xbf16>, vector<64x256xbf16>, vector<8x256xf32> -> vector<8x256xf32>
    %c0_53 = arith.constant 0 : index
    %c0_54 = arith.constant 0 : index
    %c0_55 = arith.constant 0 : index
    %189 = vector.load %arg9[%c0_53, %c0_54, %c0_55] : memref<2x1x256xf32, #tpu.memory_space<vmem>>, vector<1x1x256xf32>
    %190 = vector.shape_cast %189 : vector<1x1x256xf32> to vector<1x256xf32>
    %191 = vector.broadcast %190 : vector<1x256xf32> to vector<8x256xf32>
    %192 = arith.addf %188, %191 : vector<8x256xf32>
    %193 = vector.extract_strided_slice %192 {offsets = [0, 0], sizes = [8, 128], strides = [1, 1]} : vector<8x256xf32> to vector<8x128xf32>
    %194 = vector.extract_strided_slice %192 {offsets = [0, 128], sizes = [8, 128], strides = [1, 1]} : vector<8x256xf32> to vector<8x128xf32>
    %195 = arith.negf %193 : vector<8x128xf32>
    %196 = math.exp %195 : vector<8x128xf32>
    %cst_56 = arith.constant 1.000000e+00 : f32
    %197 = vector.broadcast %cst_56 : f32 to vector<8x128xf32>
    %198 = arith.addf %197, %196 : vector<8x128xf32>
    %199 = arith.divf %197, %198 : vector<8x128xf32>
    %200 = arith.mulf %193, %199 : vector<8x128xf32>
    %201 = arith.mulf %200, %194 : vector<8x128xf32>
    %202 = arith.truncf %201 : vector<8x128xf32> to vector<8x128xbf16>
    %c0_57 = arith.constant 0 : index
    %c0_58 = arith.constant 0 : index
    %c0_59 = arith.constant 0 : index
    %203 = vector.load %arg10[%c0_57, %c0_58, %c0_59] : memref<2x128x64xbf16, #tpu.memory_space<vmem>>, vector<1x128x64xbf16>
    %204 = vector.shape_cast %203 : vector<1x128x64xbf16> to vector<128x64xbf16>
    %cst_60 = arith.constant dense<0.000000e+00> : vector<8x64xf32>
    %205 = tpu.matmul %202, %204, %cst_60 {dimension_numbers = #tpu.dot_dimension_numbers<[1], [0], [0], [1], [0, 0, 1, 1], [], []>} : vector<8x128xbf16>, vector<128x64xbf16>, vector<8x64xf32> -> vector<8x64xf32>
    %c0_61 = arith.constant 0 : index
    %c0_62 = arith.constant 0 : index
    %c0_63 = arith.constant 0 : index
    %206 = vector.load %arg11[%c0_61, %c0_62, %c0_63] : memref<2x1x64xf32, #tpu.memory_space<vmem>>, vector<1x1x64xf32>
    %207 = vector.shape_cast %206 : vector<1x1x64xf32> to vector<1x64xf32>
    %208 = vector.broadcast %207 : vector<1x64xf32> to vector<8x64xf32>
    %209 = arith.addf %205, %208 : vector<8x64xf32>
    %210 = arith.addf %170, %209 : vector<8x64xf32>
    %c1 = arith.constant 1 : index
    %c0_64 = arith.constant 0 : index
    %c0_65 = arith.constant 0 : index
    %211 = vector.load %arg4[%c1, %c0_64, %c0_65] : memref<2x1x64xf32, #tpu.memory_space<vmem>>, vector<1x1x64xf32>
    %212 = vector.shape_cast %211 : vector<1x1x64xf32> to vector<1x64xf32>
    %213 = arith.mulf %210, %210 : vector<8x64xf32>
    %cst_66 = arith.constant dense<0.000000e+00> : vector<8xf32>
    %214 = vector.multi_reduction <add>, %213, %cst_66 [1] : vector<8x64xf32> to vector<8xf32>
    %215 = vector.shape_cast %214 : vector<8xf32> to vector<8x1xf32>
    %cst_67 = arith.constant 6.400000e+01 : f32
    %216 = vector.broadcast %cst_67 : f32 to vector<8x1xf32>
    %217 = arith.divf %215, %216 : vector<8x1xf32>
    %cst_68 = arith.constant 9.99999997E-7 : f32
    %218 = vector.broadcast %cst_68 : f32 to vector<8x1xf32>
    %219 = arith.addf %217, %218 : vector<8x1xf32>
    %220 = math.rsqrt %219 : vector<8x1xf32>
    %221 = vector.broadcast %220 : vector<8x1xf32> to vector<8x64xf32>
    %222 = arith.mulf %210, %221 : vector<8x64xf32>
    %223 = vector.broadcast %212 : vector<1x64xf32> to vector<8x64xf32>
    %224 = arith.mulf %222, %223 : vector<8x64xf32>
    %225 = arith.truncf %224 : vector<8x64xf32> to vector<8x64xbf16>
    %c1_69 = arith.constant 1 : index
    %c0_70 = arith.constant 0 : index
    %c0_71 = arith.constant 0 : index
    %226 = vector.load %arg5[%c1_69, %c0_70, %c0_71] : memref<2x64x128xbf16, #tpu.memory_space<vmem>>, vector<1x64x128xbf16>
    %227 = vector.shape_cast %226 : vector<1x64x128xbf16> to vector<64x128xbf16>
    %cst_72 = arith.constant dense<0.000000e+00> : vector<8x128xf32>
    %228 = tpu.matmul %225, %227, %cst_72 {dimension_numbers = #tpu.dot_dimension_numbers<[1], [0], [0], [1], [0, 0, 1, 1], [], []>} : vector<8x64xbf16>, vector<64x128xbf16>, vector<8x128xf32> -> vector<8x128xf32>
    %229 = vector.extract_strided_slice %228 {offsets = [0, 0], sizes = [8, 64], strides = [1, 1]} : vector<8x128xf32> to vector<8x64xf32>
    %230 = vector.extract_strided_slice %228 {offsets = [0, 64], sizes = [8, 32], strides = [1, 1]} : vector<8x128xf32> to vector<8x32xf32>
    %231 = vector.extract_strided_slice %228 {offsets = [0, 96], sizes = [8, 32], strides = [1, 1]} : vector<8x128xf32> to vector<8x32xf32>
    %232 = vector.extract_strided_slice %229 {offsets = [0, 0], sizes = [8, 8], strides = [1, 1]} : vector<8x64xf32> to vector<8x8xf32>
    %233 = vector.extract_strided_slice %229 {offsets = [0, 8], sizes = [8, 8], strides = [1, 1]} : vector<8x64xf32> to vector<8x8xf32>
    %234 = arith.mulf %232, %3 : vector<8x8xf32>
    %235 = arith.mulf %233, %2 : vector<8x8xf32>
    %236 = arith.subf %234, %235 : vector<8x8xf32>
    %237 = arith.mulf %232, %2 : vector<8x8xf32>
    %238 = arith.mulf %233, %3 : vector<8x8xf32>
    %239 = arith.addf %237, %238 : vector<8x8xf32>
    %240 = vector.extract_strided_slice %229 {offsets = [0, 16], sizes = [8, 8], strides = [1, 1]} : vector<8x64xf32> to vector<8x8xf32>
    %241 = vector.extract_strided_slice %229 {offsets = [0, 24], sizes = [8, 8], strides = [1, 1]} : vector<8x64xf32> to vector<8x8xf32>
    %242 = arith.mulf %240, %3 : vector<8x8xf32>
    %243 = arith.mulf %241, %2 : vector<8x8xf32>
    %244 = arith.subf %242, %243 : vector<8x8xf32>
    %245 = arith.mulf %240, %2 : vector<8x8xf32>
    %246 = arith.mulf %241, %3 : vector<8x8xf32>
    %247 = arith.addf %245, %246 : vector<8x8xf32>
    %248 = vector.extract_strided_slice %229 {offsets = [0, 32], sizes = [8, 8], strides = [1, 1]} : vector<8x64xf32> to vector<8x8xf32>
    %249 = vector.extract_strided_slice %229 {offsets = [0, 40], sizes = [8, 8], strides = [1, 1]} : vector<8x64xf32> to vector<8x8xf32>
    %250 = arith.mulf %248, %3 : vector<8x8xf32>
    %251 = arith.mulf %249, %2 : vector<8x8xf32>
    %252 = arith.subf %250, %251 : vector<8x8xf32>
    %253 = arith.mulf %248, %2 : vector<8x8xf32>
    %254 = arith.mulf %249, %3 : vector<8x8xf32>
    %255 = arith.addf %253, %254 : vector<8x8xf32>
    %256 = vector.extract_strided_slice %229 {offsets = [0, 48], sizes = [8, 8], strides = [1, 1]} : vector<8x64xf32> to vector<8x8xf32>
    %257 = vector.extract_strided_slice %229 {offsets = [0, 56], sizes = [8, 8], strides = [1, 1]} : vector<8x64xf32> to vector<8x8xf32>
    %258 = arith.mulf %256, %3 : vector<8x8xf32>
    %259 = arith.mulf %257, %2 : vector<8x8xf32>
    %260 = arith.subf %258, %259 : vector<8x8xf32>
    %261 = arith.mulf %256, %2 : vector<8x8xf32>
    %262 = arith.mulf %257, %3 : vector<8x8xf32>
    %263 = arith.addf %261, %262 : vector<8x8xf32>
    %264 = tpu.concatenate %236, %239, %244, %247, %252, %255, %260, %263 in 1 : vector<8x8xf32>, vector<8x8xf32>, vector<8x8xf32>, vector<8x8xf32>, vector<8x8xf32>, vector<8x8xf32>, vector<8x8xf32>, vector<8x8xf32> -> vector<8x64xf32>
    %265 = vector.extract_strided_slice %230 {offsets = [0, 0], sizes = [8, 8], strides = [1, 1]} : vector<8x32xf32> to vector<8x8xf32>
    %266 = vector.extract_strided_slice %230 {offsets = [0, 8], sizes = [8, 8], strides = [1, 1]} : vector<8x32xf32> to vector<8x8xf32>
    %267 = arith.mulf %265, %3 : vector<8x8xf32>
    %268 = arith.mulf %266, %2 : vector<8x8xf32>
    %269 = arith.subf %267, %268 : vector<8x8xf32>
    %270 = arith.mulf %265, %2 : vector<8x8xf32>
    %271 = arith.mulf %266, %3 : vector<8x8xf32>
    %272 = arith.addf %270, %271 : vector<8x8xf32>
    %273 = vector.extract_strided_slice %230 {offsets = [0, 16], sizes = [8, 8], strides = [1, 1]} : vector<8x32xf32> to vector<8x8xf32>
    %274 = vector.extract_strided_slice %230 {offsets = [0, 24], sizes = [8, 8], strides = [1, 1]} : vector<8x32xf32> to vector<8x8xf32>
    %275 = arith.mulf %273, %3 : vector<8x8xf32>
    %276 = arith.mulf %274, %2 : vector<8x8xf32>
    %277 = arith.subf %275, %276 : vector<8x8xf32>
    %278 = arith.mulf %273, %2 : vector<8x8xf32>
    %279 = arith.mulf %274, %3 : vector<8x8xf32>
    %280 = arith.addf %278, %279 : vector<8x8xf32>
    %281 = tpu.concatenate %269, %272, %277, %280 in 1 : vector<8x8xf32>, vector<8x8xf32>, vector<8x8xf32>, vector<8x8xf32> -> vector<8x32xf32>
    %282 = arith.truncf %264 : vector<8x64xf32> to vector<8x64xbf16>
    %283 = arith.truncf %281 : vector<8x32xf32> to vector<8x32xbf16>
    %284 = arith.truncf %231 : vector<8x32xf32> to vector<8x32xbf16>
    %285 = vector.extract_strided_slice %282 {offsets = [0, 0], sizes = [8, 16], strides = [1, 1]} : vector<8x64xbf16> to vector<8x16xbf16>
    %286 = vector.extract_strided_slice %283 {offsets = [0, 0], sizes = [8, 16], strides = [1, 1]} : vector<8x32xbf16> to vector<8x16xbf16>
    %287 = vector.extract_strided_slice %284 {offsets = [0, 0], sizes = [8, 16], strides = [1, 1]} : vector<8x32xbf16> to vector<8x16xbf16>
    %288 = tpu.transpose %286, [1, 0] : vector<8x16xbf16> -> vector<16x8xbf16>
    %cst_73 = arith.constant dense<0.000000e+00> : vector<8x8xf32>
    %289 = tpu.matmul %285, %288, %cst_73 {dimension_numbers = #tpu.dot_dimension_numbers<[1], [0], [0], [1], [0, 0, 1, 1], [], []>} : vector<8x16xbf16>, vector<16x8xbf16>, vector<8x8xf32> -> vector<8x8xf32>
    %cst_74 = arith.constant 2.500000e-01 : f32
    %290 = vector.broadcast %cst_74 : f32 to vector<8x8xf32>
    %291 = arith.mulf %289, %290 : vector<8x8xf32>
    %cst_75 = arith.constant -1.000000e+30 : f32
    %292 = vector.broadcast %cst_75 : f32 to vector<8x8xf32>
    %293 = arith.select %6, %291, %292 : vector<8x8xi1>, vector<8x8xf32>
    %cst_76 = arith.constant dense<0xFF800000> : vector<8xf32>
    %294 = vector.multi_reduction <maximumf>, %293, %cst_76 [1] : vector<8x8xf32> to vector<8xf32>
    %295 = vector.shape_cast %294 : vector<8xf32> to vector<8x1xf32>
    %296 = vector.broadcast %295 : vector<8x1xf32> to vector<8x8xf32>
    %297 = arith.subf %293, %296 : vector<8x8xf32>
    %298 = math.exp %297 : vector<8x8xf32>
    %cst_77 = arith.constant dense<0.000000e+00> : vector<8xf32>
    %299 = vector.multi_reduction <add>, %298, %cst_77 [1] : vector<8x8xf32> to vector<8xf32>
    %300 = vector.shape_cast %299 : vector<8xf32> to vector<8x1xf32>
    %301 = tpu.reciprocal %300 {approx = true} : vector<8x1xf32> -> vector<8x1xf32>
    %302 = vector.broadcast %301 : vector<8x1xf32> to vector<8x8xf32>
    %303 = arith.mulf %298, %302 : vector<8x8xf32>
    %304 = arith.truncf %303 : vector<8x8xf32> to vector<8x8xbf16>
    %cst_78 = arith.constant dense<0.000000e+00> : vector<8x16xf32>
    %305 = tpu.matmul %304, %287, %cst_78 {dimension_numbers = #tpu.dot_dimension_numbers<[1], [0], [0], [1], [0, 0, 1, 1], [], []>} : vector<8x8xbf16>, vector<8x16xbf16>, vector<8x16xf32> -> vector<8x16xf32>
    %306 = vector.extract_strided_slice %282 {offsets = [0, 16], sizes = [8, 16], strides = [1, 1]} : vector<8x64xbf16> to vector<8x16xbf16>
    %307 = vector.extract_strided_slice %283 {offsets = [0, 0], sizes = [8, 16], strides = [1, 1]} : vector<8x32xbf16> to vector<8x16xbf16>
    %308 = vector.extract_strided_slice %284 {offsets = [0, 0], sizes = [8, 16], strides = [1, 1]} : vector<8x32xbf16> to vector<8x16xbf16>
    %309 = tpu.transpose %307, [1, 0] : vector<8x16xbf16> -> vector<16x8xbf16>
    %cst_79 = arith.constant dense<0.000000e+00> : vector<8x8xf32>
    %310 = tpu.matmul %306, %309, %cst_79 {dimension_numbers = #tpu.dot_dimension_numbers<[1], [0], [0], [1], [0, 0, 1, 1], [], []>} : vector<8x16xbf16>, vector<16x8xbf16>, vector<8x8xf32> -> vector<8x8xf32>
    %cst_80 = arith.constant 2.500000e-01 : f32
    %311 = vector.broadcast %cst_80 : f32 to vector<8x8xf32>
    %312 = arith.mulf %310, %311 : vector<8x8xf32>
    %cst_81 = arith.constant -1.000000e+30 : f32
    %313 = vector.broadcast %cst_81 : f32 to vector<8x8xf32>
    %314 = arith.select %6, %312, %313 : vector<8x8xi1>, vector<8x8xf32>
    %cst_82 = arith.constant dense<0xFF800000> : vector<8xf32>
    %315 = vector.multi_reduction <maximumf>, %314, %cst_82 [1] : vector<8x8xf32> to vector<8xf32>
    %316 = vector.shape_cast %315 : vector<8xf32> to vector<8x1xf32>
    %317 = vector.broadcast %316 : vector<8x1xf32> to vector<8x8xf32>
    %318 = arith.subf %314, %317 : vector<8x8xf32>
    %319 = math.exp %318 : vector<8x8xf32>
    %cst_83 = arith.constant dense<0.000000e+00> : vector<8xf32>
    %320 = vector.multi_reduction <add>, %319, %cst_83 [1] : vector<8x8xf32> to vector<8xf32>
    %321 = vector.shape_cast %320 : vector<8xf32> to vector<8x1xf32>
    %322 = tpu.reciprocal %321 {approx = true} : vector<8x1xf32> -> vector<8x1xf32>
    %323 = vector.broadcast %322 : vector<8x1xf32> to vector<8x8xf32>
    %324 = arith.mulf %319, %323 : vector<8x8xf32>
    %325 = arith.truncf %324 : vector<8x8xf32> to vector<8x8xbf16>
    %cst_84 = arith.constant dense<0.000000e+00> : vector<8x16xf32>
    %326 = tpu.matmul %325, %308, %cst_84 {dimension_numbers = #tpu.dot_dimension_numbers<[1], [0], [0], [1], [0, 0, 1, 1], [], []>} : vector<8x8xbf16>, vector<8x16xbf16>, vector<8x16xf32> -> vector<8x16xf32>
    %327 = vector.extract_strided_slice %282 {offsets = [0, 32], sizes = [8, 16], strides = [1, 1]} : vector<8x64xbf16> to vector<8x16xbf16>
    %328 = vector.extract_strided_slice %283 {offsets = [0, 16], sizes = [8, 16], strides = [1, 1]} : vector<8x32xbf16> to vector<8x16xbf16>
    %329 = vector.extract_strided_slice %284 {offsets = [0, 16], sizes = [8, 16], strides = [1, 1]} : vector<8x32xbf16> to vector<8x16xbf16>
    %330 = tpu.transpose %328, [1, 0] : vector<8x16xbf16> -> vector<16x8xbf16>
    %cst_85 = arith.constant dense<0.000000e+00> : vector<8x8xf32>
    %331 = tpu.matmul %327, %330, %cst_85 {dimension_numbers = #tpu.dot_dimension_numbers<[1], [0], [0], [1], [0, 0, 1, 1], [], []>} : vector<8x16xbf16>, vector<16x8xbf16>, vector<8x8xf32> -> vector<8x8xf32>
    %cst_86 = arith.constant 2.500000e-01 : f32
    %332 = vector.broadcast %cst_86 : f32 to vector<8x8xf32>
    %333 = arith.mulf %331, %332 : vector<8x8xf32>
    %cst_87 = arith.constant -1.000000e+30 : f32
    %334 = vector.broadcast %cst_87 : f32 to vector<8x8xf32>
    %335 = arith.select %6, %333, %334 : vector<8x8xi1>, vector<8x8xf32>
    %cst_88 = arith.constant dense<0xFF800000> : vector<8xf32>
    %336 = vector.multi_reduction <maximumf>, %335, %cst_88 [1] : vector<8x8xf32> to vector<8xf32>
    %337 = vector.shape_cast %336 : vector<8xf32> to vector<8x1xf32>
    %338 = vector.broadcast %337 : vector<8x1xf32> to vector<8x8xf32>
    %339 = arith.subf %335, %338 : vector<8x8xf32>
    %340 = math.exp %339 : vector<8x8xf32>
    %cst_89 = arith.constant dense<0.000000e+00> : vector<8xf32>
    %341 = vector.multi_reduction <add>, %340, %cst_89 [1] : vector<8x8xf32> to vector<8xf32>
    %342 = vector.shape_cast %341 : vector<8xf32> to vector<8x1xf32>
    %343 = tpu.reciprocal %342 {approx = true} : vector<8x1xf32> -> vector<8x1xf32>
    %344 = vector.broadcast %343 : vector<8x1xf32> to vector<8x8xf32>
    %345 = arith.mulf %340, %344 : vector<8x8xf32>
    %346 = arith.truncf %345 : vector<8x8xf32> to vector<8x8xbf16>
    %cst_90 = arith.constant dense<0.000000e+00> : vector<8x16xf32>
    %347 = tpu.matmul %346, %329, %cst_90 {dimension_numbers = #tpu.dot_dimension_numbers<[1], [0], [0], [1], [0, 0, 1, 1], [], []>} : vector<8x8xbf16>, vector<8x16xbf16>, vector<8x16xf32> -> vector<8x16xf32>
    %348 = vector.extract_strided_slice %282 {offsets = [0, 48], sizes = [8, 16], strides = [1, 1]} : vector<8x64xbf16> to vector<8x16xbf16>
    %349 = vector.extract_strided_slice %283 {offsets = [0, 16], sizes = [8, 16], strides = [1, 1]} : vector<8x32xbf16> to vector<8x16xbf16>
    %350 = vector.extract_strided_slice %284 {offsets = [0, 16], sizes = [8, 16], strides = [1, 1]} : vector<8x32xbf16> to vector<8x16xbf16>
    %351 = tpu.transpose %349, [1, 0] : vector<8x16xbf16> -> vector<16x8xbf16>
    %cst_91 = arith.constant dense<0.000000e+00> : vector<8x8xf32>
    %352 = tpu.matmul %348, %351, %cst_91 {dimension_numbers = #tpu.dot_dimension_numbers<[1], [0], [0], [1], [0, 0, 1, 1], [], []>} : vector<8x16xbf16>, vector<16x8xbf16>, vector<8x8xf32> -> vector<8x8xf32>
    %cst_92 = arith.constant 2.500000e-01 : f32
    %353 = vector.broadcast %cst_92 : f32 to vector<8x8xf32>
    %354 = arith.mulf %352, %353 : vector<8x8xf32>
    %cst_93 = arith.constant -1.000000e+30 : f32
    %355 = vector.broadcast %cst_93 : f32 to vector<8x8xf32>
    %356 = arith.select %6, %354, %355 : vector<8x8xi1>, vector<8x8xf32>
    %cst_94 = arith.constant dense<0xFF800000> : vector<8xf32>
    %357 = vector.multi_reduction <maximumf>, %356, %cst_94 [1] : vector<8x8xf32> to vector<8xf32>
    %358 = vector.shape_cast %357 : vector<8xf32> to vector<8x1xf32>
    %359 = vector.broadcast %358 : vector<8x1xf32> to vector<8x8xf32>
    %360 = arith.subf %356, %359 : vector<8x8xf32>
    %361 = math.exp %360 : vector<8x8xf32>
    %cst_95 = arith.constant dense<0.000000e+00> : vector<8xf32>
    %362 = vector.multi_reduction <add>, %361, %cst_95 [1] : vector<8x8xf32> to vector<8xf32>
    %363 = vector.shape_cast %362 : vector<8xf32> to vector<8x1xf32>
    %364 = tpu.reciprocal %363 {approx = true} : vector<8x1xf32> -> vector<8x1xf32>
    %365 = vector.broadcast %364 : vector<8x1xf32> to vector<8x8xf32>
    %366 = arith.mulf %361, %365 : vector<8x8xf32>
    %367 = arith.truncf %366 : vector<8x8xf32> to vector<8x8xbf16>
    %cst_96 = arith.constant dense<0.000000e+00> : vector<8x16xf32>
    %368 = tpu.matmul %367, %350, %cst_96 {dimension_numbers = #tpu.dot_dimension_numbers<[1], [0], [0], [1], [0, 0, 1, 1], [], []>} : vector<8x8xbf16>, vector<8x16xbf16>, vector<8x16xf32> -> vector<8x16xf32>
    %369 = tpu.concatenate %305, %326, %347, %368 in 1 : vector<8x16xf32>, vector<8x16xf32>, vector<8x16xf32>, vector<8x16xf32> -> vector<8x64xf32>
    %370 = arith.truncf %369 : vector<8x64xf32> to vector<8x64xbf16>
    %c1_97 = arith.constant 1 : index
    %c0_98 = arith.constant 0 : index
    %c0_99 = arith.constant 0 : index
    %371 = vector.load %arg6[%c1_97, %c0_98, %c0_99] : memref<2x64x64xbf16, #tpu.memory_space<vmem>>, vector<1x64x64xbf16>
    %372 = vector.shape_cast %371 : vector<1x64x64xbf16> to vector<64x64xbf16>
    %cst_100 = arith.constant dense<0.000000e+00> : vector<8x64xf32>
    %373 = tpu.matmul %370, %372, %cst_100 {dimension_numbers = #tpu.dot_dimension_numbers<[1], [0], [0], [1], [0, 0, 1, 1], [], []>} : vector<8x64xbf16>, vector<64x64xbf16>, vector<8x64xf32> -> vector<8x64xf32>
    %374 = arith.addf %210, %373 : vector<8x64xf32>
    %c1_101 = arith.constant 1 : index
    %c0_102 = arith.constant 0 : index
    %c0_103 = arith.constant 0 : index
    %375 = vector.load %arg7[%c1_101, %c0_102, %c0_103] : memref<2x1x64xf32, #tpu.memory_space<vmem>>, vector<1x1x64xf32>
    %376 = vector.shape_cast %375 : vector<1x1x64xf32> to vector<1x64xf32>
    %377 = arith.mulf %374, %374 : vector<8x64xf32>
    %cst_104 = arith.constant dense<0.000000e+00> : vector<8xf32>
    %378 = vector.multi_reduction <add>, %377, %cst_104 [1] : vector<8x64xf32> to vector<8xf32>
    %379 = vector.shape_cast %378 : vector<8xf32> to vector<8x1xf32>
    %cst_105 = arith.constant 6.400000e+01 : f32
    %380 = vector.broadcast %cst_105 : f32 to vector<8x1xf32>
    %381 = arith.divf %379, %380 : vector<8x1xf32>
    %cst_106 = arith.constant 9.99999997E-7 : f32
    %382 = vector.broadcast %cst_106 : f32 to vector<8x1xf32>
    %383 = arith.addf %381, %382 : vector<8x1xf32>
    %384 = math.rsqrt %383 : vector<8x1xf32>
    %385 = vector.broadcast %384 : vector<8x1xf32> to vector<8x64xf32>
    %386 = arith.mulf %374, %385 : vector<8x64xf32>
    %387 = vector.broadcast %376 : vector<1x64xf32> to vector<8x64xf32>
    %388 = arith.mulf %386, %387 : vector<8x64xf32>
    %389 = arith.truncf %388 : vector<8x64xf32> to vector<8x64xbf16>
    %c1_107 = arith.constant 1 : index
    %c0_108 = arith.constant 0 : index
    %c0_109 = arith.constant 0 : index
    %390 = vector.load %arg8[%c1_107, %c0_108, %c0_109] : memref<2x64x256xbf16, #tpu.memory_space<vmem>>, vector<1x64x256xbf16>
    %391 = vector.shape_cast %390 : vector<1x64x256xbf16> to vector<64x256xbf16>
    %cst_110 = arith.constant dense<0.000000e+00> : vector<8x256xf32>
    %392 = tpu.matmul %389, %391, %cst_110 {dimension_numbers = #tpu.dot_dimension_numbers<[1], [0], [0], [1], [0, 0, 1, 1], [], []>} : vector<8x64xbf16>, vector<64x256xbf16>, vector<8x256xf32> -> vector<8x256xf32>
    %c1_111 = arith.constant 1 : index
    %c0_112 = arith.constant 0 : index
    %c0_113 = arith.constant 0 : index
    %393 = vector.load %arg9[%c1_111, %c0_112, %c0_113] : memref<2x1x256xf32, #tpu.memory_space<vmem>>, vector<1x1x256xf32>
    %394 = vector.shape_cast %393 : vector<1x1x256xf32> to vector<1x256xf32>
    %395 = vector.broadcast %394 : vector<1x256xf32> to vector<8x256xf32>
    %396 = arith.addf %392, %395 : vector<8x256xf32>
    %397 = vector.extract_strided_slice %396 {offsets = [0, 0], sizes = [8, 128], strides = [1, 1]} : vector<8x256xf32> to vector<8x128xf32>
    %398 = vector.extract_strided_slice %396 {offsets = [0, 128], sizes = [8, 128], strides = [1, 1]} : vector<8x256xf32> to vector<8x128xf32>
    %399 = arith.negf %397 : vector<8x128xf32>
    %400 = math.exp %399 : vector<8x128xf32>
    %cst_114 = arith.constant 1.000000e+00 : f32
    %401 = vector.broadcast %cst_114 : f32 to vector<8x128xf32>
    %402 = arith.addf %401, %400 : vector<8x128xf32>
    %403 = arith.divf %401, %402 : vector<8x128xf32>
    %404 = arith.mulf %397, %403 : vector<8x128xf32>
    %405 = arith.mulf %404, %398 : vector<8x128xf32>
    %406 = arith.truncf %405 : vector<8x128xf32> to vector<8x128xbf16>
    %c1_115 = arith.constant 1 : index
    %c0_116 = arith.constant 0 : index
    %c0_117 = arith.constant 0 : index
    %407 = vector.load %arg10[%c1_115, %c0_116, %c0_117] : memref<2x128x64xbf16, #tpu.memory_space<vmem>>, vector<1x128x64xbf16>
    %408 = vector.shape_cast %407 : vector<1x128x64xbf16> to vector<128x64xbf16>
    %cst_118 = arith.constant dense<0.000000e+00> : vector<8x64xf32>
    %409 = tpu.matmul %406, %408, %cst_118 {dimension_numbers = #tpu.dot_dimension_numbers<[1], [0], [0], [1], [0, 0, 1, 1], [], []>} : vector<8x128xbf16>, vector<128x64xbf16>, vector<8x64xf32> -> vector<8x64xf32>
    %c1_119 = arith.constant 1 : index
    %c0_120 = arith.constant 0 : index
    %c0_121 = arith.constant 0 : index
    %410 = vector.load %arg11[%c1_119, %c0_120, %c0_121] : memref<2x1x64xf32, #tpu.memory_space<vmem>>, vector<1x1x64xf32>
    %411 = vector.shape_cast %410 : vector<1x1x64xf32> to vector<1x64xf32>
    %412 = vector.broadcast %411 : vector<1x64xf32> to vector<8x64xf32>
    %413 = arith.addf %409, %412 : vector<8x64xf32>
    %414 = arith.addf %374, %413 : vector<8x64xf32>
    %c0_122 = arith.constant 0 : index
    %c0_123 = arith.constant 0 : index
    %c0_124 = arith.constant 0 : index
    %415 = vector.load %arg12[%c0_122, %c0_123, %c0_124] : memref<1x1x64xf32, #tpu.memory_space<vmem>>, vector<1x1x64xf32>
    %416 = vector.shape_cast %415 : vector<1x1x64xf32> to vector<1x64xf32>
    %417 = arith.mulf %414, %414 : vector<8x64xf32>
    %cst_125 = arith.constant dense<0.000000e+00> : vector<8xf32>
    %418 = vector.multi_reduction <add>, %417, %cst_125 [1] : vector<8x64xf32> to vector<8xf32>
    %419 = vector.shape_cast %418 : vector<8xf32> to vector<8x1xf32>
    %cst_126 = arith.constant 6.400000e+01 : f32
    %420 = vector.broadcast %cst_126 : f32 to vector<8x1xf32>
    %421 = arith.divf %419, %420 : vector<8x1xf32>
    %cst_127 = arith.constant 9.99999997E-7 : f32
    %422 = vector.broadcast %cst_127 : f32 to vector<8x1xf32>
    %423 = arith.addf %421, %422 : vector<8x1xf32>
    %424 = math.rsqrt %423 : vector<8x1xf32>
    %425 = vector.broadcast %424 : vector<8x1xf32> to vector<8x64xf32>
    %426 = arith.mulf %414, %425 : vector<8x64xf32>
    %427 = vector.broadcast %416 : vector<1x64xf32> to vector<8x64xf32>
    %428 = arith.mulf %426, %427 : vector<8x64xf32>
    %429 = arith.truncf %428 : vector<8x64xf32> to vector<8x64xbf16>
    %c0_128 = arith.constant 0 : index
    %c0_129 = arith.constant 0 : index
    %430 = vector.load %arg13[%c0_128, %c0_129] : memref<64x256xbf16, #tpu.memory_space<vmem>>, vector<64x256xbf16>
    %cst_130 = arith.constant dense<0.000000e+00> : vector<8x256xf32>
    %431 = tpu.matmul %429, %430, %cst_130 {dimension_numbers = #tpu.dot_dimension_numbers<[1], [0], [0], [1], [0, 0, 1, 1], [], []>} : vector<8x64xbf16>, vector<64x256xbf16>, vector<8x256xf32> -> vector<8x256xf32>
    %c0_131 = arith.constant 0 : index
    %c0_132 = arith.constant 0 : index
    %c0_133 = arith.constant 0 : index
    %432 = vector.load %arg14[%c0_131, %c0_132, %c0_133] : memref<1x8x256xf32, #tpu.memory_space<vmem>>, vector<1x8x256xf32>
    %433 = vector.shape_cast %432 : vector<1x8x256xf32> to vector<8x256xf32>
    %434 = vector.shape_cast %431 : vector<8x256xf32> to vector<1x8x256xf32>
    tpu.vector_store %arg14[%c0_131, %c0_132, %c0_133], %434 {strides = array<i32>} : memref<1x8x256xf32, #tpu.memory_space<vmem>>, vector<1x8x256xf32>,
    return
  }
  func.func @transform_0(%arg0: i32) -> (i32, i32, i32) {
    %c0_i32 = arith.constant 0 : i32
    %c0_i32_0 = arith.constant 0 : i32
    %c0_i32_1 = arith.constant 0 : i32
    return %arg0, %c0_i32, %c0_i32_0 : i32, i32, i32
  }
  func.func @transform_1(%arg0: i32) -> (i32, i32) {
    %c0_i32 = arith.constant 0 : i32
    %c0_i32_0 = arith.constant 0 : i32
    %c0_i32_1 = arith.constant 0 : i32
    return %c0_i32, %c0_i32_0 : i32, i32
  }
  func.func @transform_2(%arg0: i32) -> (i32, i32) {
    %c0_i32 = arith.constant 0 : i32
    %c0_i32_0 = arith.constant 0 : i32
    %c0_i32_1 = arith.constant 0 : i32
    return %c0_i32, %c0_i32_0 : i32, i32
  }
  func.func @transform_3(%arg0: i32) -> (i32, i32, i32) {
    %c0_i32 = arith.constant 0 : i32
    %c0_i32_0 = arith.constant 0 : i32
    %c0_i32_1 = arith.constant 0 : i32
    %c0_i32_2 = arith.constant 0 : i32
    return %c0_i32, %c0_i32_0, %c0_i32_1 : i32, i32, i32
  }
  func.func @transform_4(%arg0: i32) -> (i32, i32, i32) {
    %c0_i32 = arith.constant 0 : i32
    %c0_i32_0 = arith.constant 0 : i32
    %c0_i32_1 = arith.constant 0 : i32
    %c0_i32_2 = arith.constant 0 : i32
    return %c0_i32, %c0_i32_0, %c0_i32_1 : i32, i32, i32
  }
  func.func @transform_5(%arg0: i32) -> (i32, i32, i32) {
    %c0_i32 = arith.constant 0 : i32
    %c0_i32_0 = arith.constant 0 : i32
    %c0_i32_1 = arith.constant 0 : i32
    %c0_i32_2 = arith.constant 0 : i32
    return %c0_i32, %c0_i32_0, %c0_i32_1 : i32, i32, i32
  }
  func.func @transform_6(%arg0: i32) -> (i32, i32, i32) {
    %c0_i32 = arith.constant 0 : i32
    %c0_i32_0 = arith.constant 0 : i32
    %c0_i32_1 = arith.constant 0 : i32
    %c0_i32_2 = arith.constant 0 : i32
    return %c0_i32, %c0_i32_0, %c0_i32_1 : i32, i32, i32
  }
  func.func @transform_7(%arg0: i32) -> (i32, i32, i32) {
    %c0_i32 = arith.constant 0 : i32
    %c0_i32_0 = arith.constant 0 : i32
    %c0_i32_1 = arith.constant 0 : i32
    %c0_i32_2 = arith.constant 0 : i32
    return %c0_i32, %c0_i32_0, %c0_i32_1 : i32, i32, i32
  }
  func.func @transform_8(%arg0: i32) -> (i32, i32, i32) {
    %c0_i32 = arith.constant 0 : i32
    %c0_i32_0 = arith.constant 0 : i32
    %c0_i32_1 = arith.constant 0 : i32
    %c0_i32_2 = arith.constant 0 : i32
    return %c0_i32, %c0_i32_0, %c0_i32_1 : i32, i32, i32
  }
  func.func @transform_9(%arg0: i32) -> (i32, i32, i32) {
    %c0_i32 = arith.constant 0 : i32
    %c0_i32_0 = arith.constant 0 : i32
    %c0_i32_1 = arith.constant 0 : i32
    %c0_i32_2 = arith.constant 0 : i32
    return %c0_i32, %c0_i32_0, %c0_i32_1 : i32, i32, i32
  }
  func.func @transform_10(%arg0: i32) -> (i32, i32, i32) {
    %c0_i32 = arith.constant 0 : i32
    %c0_i32_0 = arith.constant 0 : i32
    %c0_i32_1 = arith.constant 0 : i32
    %c0_i32_2 = arith.constant 0 : i32
    return %c0_i32, %c0_i32_0, %c0_i32_1 : i32, i32, i32
  }
  func.func @transform_11(%arg0: i32) -> (i32, i32, i32) {
    %c0_i32 = arith.constant 0 : i32
    %c0_i32_0 = arith.constant 0 : i32
    %c0_i32_1 = arith.constant 0 : i32
    %c0_i32_2 = arith.constant 0 : i32
    return %c0_i32, %c0_i32_0, %c0_i32_1 : i32, i32, i32
  }
  func.func @transform_12(%arg0: i32) -> (i32, i32) {
    %c0_i32 = arith.constant 0 : i32
    %c0_i32_0 = arith.constant 0 : i32
    %c0_i32_1 = arith.constant 0 : i32
    return %c0_i32, %c0_i32_0 : i32, i32
  }
  func.func @transform_13(%arg0: i32) -> (i32, i32, i32) {
    %c0_i32 = arith.constant 0 : i32
    %c0_i32_0 = arith.constant 0 : i32
    %c0_i32_1 = arith.constant 0 : i32
    return %arg0, %c0_i32, %c0_i32_0 : i32, i32, i32
  }
}

</mosaic_0001>

<llo_original>
// kernel: llama_forward.1
$region0: #{llama_forward.1}
  #allocation0 [shape = 'u32[]', space=smem, size = 0x4, offset = 0x4, fixed_abs, tag = 'smem constant byte address 0x4 - core index']
  #allocation1 [shape = 'u32[72,128]{1,0:T(1,128)}', space=vmem, size = 0x9000, scoped, tag = 'internal scratch']
  %s0 = inlined_call_operand.vmem [shape: f32[2,8,64], index: 0, kind: input, shape index: {}]
  %s1 = inlined_call_operand.vmem [shape: f32[8,8], index: 1, kind: input, shape index: {}]
  %s2 = inlined_call_operand.vmem [shape: f32[8,8], index: 2, kind: input, shape index: {}]
  %s3 = inlined_call_operand.vmem [shape: f32[2,1,64], index: 3, kind: input, shape index: {}]
  %s4 = inlined_call_operand.vmem [shape: bf16[2,64,128], index: 4, kind: input, shape index: {}]
  %s5 = inlined_call_operand.vmem [shape: bf16[2,64,64], index: 5, kind: input, shape index: {}]
  %s6 = inlined_call_operand.vmem [shape: f32[2,1,64], index: 6, kind: input, shape index: {}]
  %s7 = inlined_call_operand.vmem [shape: bf16[2,64,256], index: 7, kind: input, shape index: {}]
  %s8 = inlined_call_operand.vmem [shape: f32[2,1,256], index: 8, kind: input, shape index: {}]
  %s9 = inlined_call_operand.vmem [shape: bf16[2,128,64], index: 9, kind: input, shape index: {}]
  %s10 = inlined_call_operand.vmem [shape: f32[2,1,64], index: 10, kind: input, shape index: {}]
  %s11 = inlined_call_operand.vmem [shape: f32[1,1,64], index: 11, kind: input, shape index: {}]
  %s12 = inlined_call_operand.vmem [shape: bf16[64,256], index: 12, kind: input, shape index: {}]
  %s13 = inlined_call_operand.hbm [shape: f32[2,8,256], index: 13, kind: output, shape index: {}]
  %s14 = sld [smem:[#allocation0]]
  $region85: #{llama_forward.1} parent=0
    _
  %s16 = ssub.s32 1, %s14
  %s17 = scalar_select 0, %s16, %s14
  $region1: #{llama_forward.1} parent=0
    #allocation2 [shape = 'u8[16384]{0}', space=vmem, size = 0x4000, scoped, tag = 'output window, operand 0']
    #allocation3 [shape = 's32[2]{0}', space=sflag, size = 0x8, scoped, tag = 'scoped memory for llama_forward.1']
    %18 = vsyncpa [#allocation3], 0
    %s19 = scalar_lea.sflag [#allocation3], 1
    %20 = vsyncpa %s19, 0
    loop: start=0, step=1, limit=4
    $region2: #{llama_forward.1} parent=1 // loop_pre_header
      _
    $region3: #{llama_forward.1} parent=1 // loop_header
      %s22 = sphi 0, %s26
      %p23 = scmp.ge.s32.totalorder %s22, 4
      %s32 = sphi 0, %s34
      %s35 = sphi 0, %s32
      %s36 = sphi 0, %s35
      %s52 = sphi 0, %s36
      %s56 = sphi 0, %s56
      %s58 = sphi 0, %s56
      %s59 = sphi 0, %s58
      %s73 = sphi 0, %s59
      %s77 = sphi 0, %s77
      %s79 = sphi 0, %s77
      %s80 = sphi 0, %s79
      %s94 = sphi 0, %s80
      %s98 = sphi 0, %s98
      %s100 = sphi 0, %s98
      %s101 = sphi 0, %s100
      %s115 = sphi 0, %s101
      %s119 = sphi 0, %s119
      %s121 = sphi 0, %s119
      %s122 = sphi 0, %s121
      %s136 = sphi 0, %s122
      %s140 = sphi 0, %s140
      %s142 = sphi 0, %s140
      %s143 = sphi 0, %s142
      %s157 = sphi 0, %s143
      %s161 = sphi 0, %s161
      %s163 = sphi 0, %s161
      %s164 = sphi 0, %s163
      %s178 = sphi 0, %s164
      %s182 = sphi 0, %s182
      %s184 = sphi 0, %s182
      %s185 = sphi 0, %s184
      %s199 = sphi 0, %s185
      %s203 = sphi 0, %s203
      %s205 = sphi 0, %s203
      %s206 = sphi 0, %s205
      %s220 = sphi 0, %s206
      %s224 = sphi 0, %s224
      %s226 = sphi 0, %s224
      %s227 = sphi 0, %s226
      %s241 = sphi 0, %s227
      %s245 = sphi 0, %s245
      %s247 = sphi 0, %s245
      %s248 = sphi 0, %s247
      %s262 = sphi 0, %s248
      %s266 = sphi 0, %s266
      %s268 = sphi 0, %s266
      %s269 = sphi 0, %s268
      %s283 = sphi 0, %s269
      %s287 = sphi 0, %s287
      %s289 = sphi 0, %s287
      %s290 = sphi 0, %s289
      %s304 = sphi 0, %s290
      %s310 = sphi 0, %s312
      %s313 = sphi 0, %s310
      %s314 = sphi 0, %s313
      %s330 = sphi 0, %s314
    $region4: #{llama_forward.1} parent=1 // loop_header_branch
      %25 = sbr.rel (%p23) target = $region8
    $region5: #{llama_forward.1} parent=1 // loop_body
      %s27 = ssub.s32 %s22, 1
      %s28 = ssub.s32 %s22, 2
      %s29 = sadd.s32 %s22, 1
      %s30 = ssub.s32 %s22, %s29
      %p31 = scmp.eq.s32.totalorder %s30, 0
      %s33 = sadd.s32 %s32, 1
      %s34 = scalar_select %p31, %s32, %s33
      %p37 = pneg %p31
      %p38 = scmp.eq.s32.totalorder %s22, 1
      %p39 = por %p37, %p38
      %p40 = scmp.ne.s32.totalorder %s32, %s35
      %p41 = scmp.eq.s32.totalorder %s22, 0
      %p42 = por %p40, %p41
      %p43 = scmp.ne.s32.totalorder %s32, %s35
      %p44 = scmp.eq.s32.totalorder %s27, 1
      %p45 = por %p43, %p44
      %p46 = scmp.ne.s32.totalorder %s35, %s36
      %p47 = scmp.eq.s32.totalorder %s27, 0
      %p48 = por %p46, %p47
      %p49 = scmp.ne.s32.totalorder %s35, %s36
      %p50 = scmp.eq.s32.totalorder %s28, 1
      %p51 = por %p49, %p50
      %p53 = scmp.ne.s32.totalorder %s36, %s52
      %p54 = scmp.eq.s32.totalorder %s28, 0
      %p55 = por %p53, %p54
      %s57 = sadd.s32 %s56, 1
      %p60 = scmp.eq.s32.totalorder %s22, 1
      %p61 = scmp.ne.s32.totalorder %s56, %s58
      %p62 = scmp.eq.s32.totalorder %s22, 0
      %p63 = por %p61, %p62
      %p64 = scmp.ne.s32.totalorder %s56, %s58
      %p65 = scmp.eq.s32.totalorder %s27, 1
      %p66 = por %p64, %p65
      %p67 = scmp.ne.s32.totalorder %s58, %s59
      %p68 = scmp.eq.s32.totalorder %s27, 0
      %p69 = por %p67, %p68
      %p70 = scmp.ne.s32.totalorder %s58, %s59
      %p71 = scmp.eq.s32.totalorder %s28, 1
      %p72 = por %p70, %p71
      %p74 = scmp.ne.s32.totalorder %s59, %s73
      %p75 = scmp.eq.s32.totalorder %s28, 0
      %p76 = por %p74, %p75
      %s78 = sadd.s32 %s77, 1
      %p81 = scmp.eq.s32.totalorder %s22, 1
      %p82 = scmp.ne.s32.totalorder %s77, %s79
      %p83 = scmp.eq.s32.totalorder %s22, 0
      %p84 = por %p82, %p83
      %p85 = scmp.ne.s32.totalorder %s77, %s79
      %p86 = scmp.eq.s32.totalorder %s27, 1
      %p87 = por %p85, %p86
      %p88 = scmp.ne.s32.totalorder %s79, %s80
      %p89 = scmp.eq.s32.totalorder %s27, 0
      %p90 = por %p88, %p89
      %p91 = scmp.ne.s32.totalorder %s79, %s80
      %p92 = scmp.eq.s32.totalorder %s28, 1
      %p93 = por %p91, %p92
      %p95 = scmp.ne.s32.totalorder %s80, %s94
      %p96 = scmp.eq.s32.totalorder %s28, 0
      %p97 = por %p95, %p96
      %s99 = sadd.s32 %s98, 1
      %p102 = scmp.eq.s32.totalorder %s22, 1
      %p103 = scmp.ne.s32.totalorder %s98, %s100
      %p104 = scmp.eq.s32.totalorder %s22, 0
      %p105 = por %p103, %p104
      %p106 = scmp.ne.s32.totalorder %s98, %s100
      %p107 = scmp.eq.s32.totalorder %s27, 1
      %p108 = por %p106, %p107
      %p109 = scmp.ne.s32.totalorder %s100, %s101
      %p110 = scmp.eq.s32.totalorder %s27, 0
      %p111 = por %p109, %p110
      %p112 = scmp.ne.s32.totalorder %s100, %s101
      %p113 = scmp.eq.s32.totalorder %s28, 1
      %p114 = por %p112, %p113
      %p116 = scmp.ne.s32.totalorder %s101, %s115
      %p117 = scmp.eq.s32.totalorder %s28, 0
      %p118 = por %p116, %p117
      %s120 = sadd.s32 %s119, 1
      %p123 = scmp.eq.s32.totalorder %s22, 1
      %p124 = scmp.ne.s32.totalorder %s119, %s121
      %p125 = scmp.eq.s32.totalorder %s22, 0
      %p126 = por %p124, %p125
      %p127 = scmp.ne.s32.totalorder %s119, %s121
      %p128 = scmp.eq.s32.totalorder %s27, 1
      %p129 = por %p127, %p128
      %p130 = scmp.ne.s32.totalorder %s121, %s122
      %p131 = scmp.eq.s32.totalorder %s27, 0
      %p132 = por %p130, %p131
      %p133 = scmp.ne.s32.totalorder %s121, %s122
      %p134 = scmp.eq.s32.totalorder %s28, 1
      %p135 = por %p133, %p134
      %p137 = scmp.ne.s32.totalorder %s122, %s136
      %p138 = scmp.eq.s32.totalorder %s28, 0
      %p139 = por %p137, %p138
      %s141 = sadd.s32 %s140, 1
      %p144 = scmp.eq.s32.totalorder %s22, 1
      %p145 = scmp.ne.s32.totalorder %s140, %s142
      %p146 = scmp.eq.s32.totalorder %s22, 0
      %p147 = por %p145, %p146
      %p148 = scmp.ne.s32.totalorder %s140, %s142
      %p149 = scmp.eq.s32.totalorder %s27, 1
      %p150 = por %p148, %p149
      %p151 = scmp.ne.s32.totalorder %s142, %s143
      %p152 = scmp.eq.s32.totalorder %s27, 0
      %p153 = por %p151, %p152
      %p154 = scmp.ne.s32.totalorder %s142, %s143
      %p155 = scmp.eq.s32.totalorder %s28, 1
      %p156 = por %p154, %p155
      %p158 = scmp.ne.s32.totalorder %s143, %s157
      %p159 = scmp.eq.s32.totalorder %s28, 0
      %p160 = por %p158, %p159
      %s162 = sadd.s32 %s161, 1
      %p165 = scmp.eq.s32.totalorder %s22, 1
      %p166 = scmp.ne.s32.totalorder %s161, %s163
      %p167 = scmp.eq.s32.totalorder %s22, 0
      %p168 = por %p166, %p167
      %p169 = scmp.ne.s32.totalorder %s161, %s163
      %p170 = scmp.eq.s32.totalorder %s27, 1
      %p171 = por %p169, %p170
      %p172 = scmp.ne.s32.totalorder %s163, %s164
      %p173 = scmp.eq.s32.totalorder %s27, 0
      %p174 = por %p172, %p173
      %p175 = scmp.ne.s32.totalorder %s163, %s164
      %p176 = scmp.eq.s32.totalorder %s28, 1
      %p177 = por %p175, %p176
      %p179 = scmp.ne.s32.totalorder %s164, %s178
      %p180 = scmp.eq.s32.totalorder %s28, 0
      %p181 = por %p179, %p180
      %s183 = sadd.s32 %s182, 1
      %p186 = scmp.eq.s32.totalorder %s22, 1
      %p187 = scmp.ne.s32.totalorder %s182, %s184
      %p188 = scmp.eq.s32.totalorder %s22, 0
      %p189 = por %p187, %p188
      %p190 = scmp.ne.s32.totalorder %s182, %s184
      %p191 = scmp.eq.s32.totalorder %s27, 1
      %p192 = por %p190, %p191
      %p193 = scmp.ne.s32.totalorder %s184, %s185
      %p194 = scmp.eq.s32.totalorder %s27, 0
      %p195 = por %p193, %p194
      %p196 = scmp.ne.s32.totalorder %s184, %s185
      %p197 = scmp.eq.s32.totalorder %s28, 1
      %p198 = por %p196, %p197
      %p200 = scmp.ne.s32.totalorder %s185, %s199
      %p201 = scmp.eq.s32.totalorder %s28, 0
      %p202 = por %p200, %p201
      %s204 = sadd.s32 %s203, 1
      %p207 = scmp.eq.s32.totalorder %s22, 1
      %p208 = scmp.ne.s32.totalorder %s203, %s205
      %p209 = scmp.eq.s32.totalorder %s22, 0
      %p210 = por %p208, %p209
      %p211 = scmp.ne.s32.totalorder %s203, %s205
      %p212 = scmp.eq.s32.totalorder %s27, 1
      %p213 = por %p211, %p212
      %p214 = scmp.ne.s32.totalorder %s205, %s206
      %p215 = scmp.eq.s32.totalorder %s27, 0
      %p216 = por %p214, %p215
      %p217 = scmp.ne.s32.totalorder %s205, %s206
      %p218 = scmp.eq.s32.totalorder %s28, 1
      %p219 = por %p217, %p218
      %p221 = scmp.ne.s32.totalorder %s206, %s220
      %p222 = scmp.eq.s32.totalorder %s28, 0
      %p223 = por %p221, %p222
      %s225 = sadd.s32 %s224, 1
      %p228 = scmp.eq.s32.totalorder %s22, 1
      %p229 = scmp.ne.s32.totalorder %s224, %s226
      %p230 = scmp.eq.s32.totalorder %s22, 0
      %p231 = por %p229, %p230
      %p232 = scmp.ne.s32.totalorder %s224, %s226
      %p233 = scmp.eq.s32.totalorder %s27, 1
      %p234 = por %p232, %p233
      %p235 = scmp.ne.s32.totalorder %s226, %s227
      %p236 = scmp.eq.s32.totalorder %s27, 0
      %p237 = por %p235, %p236
      %p238 = scmp.ne.s32.totalorder %s226, %s227
      %p239 = scmp.eq.s32.totalorder %s28, 1
      %p240 = por %p238, %p239
      %p242 = scmp.ne.s32.totalorder %s227, %s241
      %p243 = scmp.eq.s32.totalorder %s28, 0
      %p244 = por %p242, %p243
      %s246 = sadd.s32 %s245, 1
      %p249 = scmp.eq.s32.totalorder %s22, 1
      %p250 = scmp.ne.s32.totalorder %s245, %s247
      %p251 = scmp.eq.s32.totalorder %s22, 0
      %p252 = por %p250, %p251
      %p253 = scmp.ne.s32.totalorder %s245, %s247
      %p254 = scmp.eq.s32.totalorder %s27, 1
      %p255 = por %p253, %p254
      %p256 = scmp.ne.s32.totalorder %s247, %s248
      %p257 = scmp.eq.s32.totalorder %s27, 0
      %p258 = por %p256, %p257
      %p259 = scmp.ne.s32.totalorder %s247, %s248
      %p260 = scmp.eq.s32.totalorder %s28, 1
      %p261 = por %p259, %p260
      %p263 = scmp.ne.s32.totalorder %s248, %s262
      %p264 = scmp.eq.s32.totalorder %s28, 0
      %p265 = por %p263, %p264
      %s267 = sadd.s32 %s266, 1
      %p270 = scmp.eq.s32.totalorder %s22, 1
      %p271 = scmp.ne.s32.totalorder %s266, %s268
      %p272 = scmp.eq.s32.totalorder %s22, 0
      %p273 = por %p271, %p272
      %p274 = scmp.ne.s32.totalorder %s266, %s268
      %p275 = scmp.eq.s32.totalorder %s27, 1
      %p276 = por %p274, %p275
      %p277 = scmp.ne.s32.totalorder %s268, %s269
      %p278 = scmp.eq.s32.totalorder %s27, 0
      %p279 = por %p277, %p278
      %p280 = scmp.ne.s32.totalorder %s268, %s269
      %p281 = scmp.eq.s32.totalorder %s28, 1
      %p282 = por %p280, %p281
      %p284 = scmp.ne.s32.totalorder %s269, %s283
      %p285 = scmp.eq.s32.totalorder %s28, 0
      %p286 = por %p284, %p285
      %s288 = sadd.s32 %s287, 1
      %p291 = scmp.eq.s32.totalorder %s22, 1
      %p292 = scmp.ne.s32.totalorder %s287, %s289
      %p293 = scmp.eq.s32.totalorder %s22, 0
      %p294 = por %p292, %p293
      %p295 = scmp.ne.s32.totalorder %s287, %s289
      %p296 = scmp.eq.s32.totalorder %s27, 1
      %p297 = por %p295, %p296
      %p298 = scmp.ne.s32.totalorder %s289, %s290
      %p299 = scmp.eq.s32.totalorder %s27, 0
      %p300 = por %p298, %p299
      %p301 = scmp.ne.s32.totalorder %s289, %s290
      %p302 = scmp.eq.s32.totalorder %s28, 1
      %p303 = por %p301, %p302
      %p305 = scmp.ne.s32.totalorder %s290, %s304
      %p306 = scmp.eq.s32.totalorder %s28, 0
      %p307 = por %p305, %p306
      %s308 = ssub.s32 %s22, %s29
      %p309 = scmp.eq.s32.totalorder %s308, 0
      %s311 = sadd.s32 %s310, 1
      %s312 = scalar_select %p309, %s310, %s311
      %p315 = pneg %p309
      %p316 = scmp.eq.s32.totalorder %s22, 1
      %p317 = por %p315, %p316
      %p318 = scmp.ne.s32.totalorder %s310, %s313
      %p319 = scmp.eq.s32.totalorder %s22, 0
      %p320 = por %p318, %p319
      %p321 = scmp.ne.s32.totalorder %s310, %s313
      %p322 = scmp.eq.s32.totalorder %s27, 1
      %p323 = por %p321, %p322
      %p324 = scmp.ne.s32.totalorder %s313, %s314
      %p325 = scmp.eq.s32.totalorder %s27, 0
      %p326 = por %p324, %p325
      %p327 = scmp.ne.s32.totalorder %s313, %s314
      %p328 = scmp.eq.s32.totalorder %s28, 1
      %p329 = por %p327, %p328
      %p331 = scmp.ne.s32.totalorder %s314, %s330
      %p332 = scmp.eq.s32.totalorder %s28, 0
      %p333 = por %p331, %p332
      %p334 = scmp.le.s32.totalorder 1, %s22
      %p335 = scmp.lt.s32.totalorder %s22, 3
      %p336 = pnand %p334, %p335
      %p337 = pneg %p336
      // Predicated region
      $region9: #{llama_forward.1} parent=5 // pred_check
        _
      $region10: #{llama_forward.1} parent=5 // pred_check_branch
        %339 = sbr.rel (%p336) target = $region12
      $region11: #{llama_forward.1} parent=5 // pred_region
        %s340 = ssub.s32 %s22, 1
        // Predicated region
        $region13: #{llama_forward.1} parent=11 // pred_check
          %p341 = pneg %p69
        $region14: #{llama_forward.1} parent=11 // pred_check_branch
          %343 = sbr.rel (%p341) target = $region16
        $region15: #{llama_forward.1} parent=11 // pred_region
          _
        $region16: #{llama_forward.1} parent=11 // pred_fallthru
          _
        // Predicated region
        $region17: #{llama_forward.1} parent=11 // pred_check
          %p344 = pneg %p90
        $region18: #{llama_forward.1} parent=11 // pred_check_branch
          %346 = sbr.rel (%p344) target = $region20
        $region19: #{llama_forward.1} parent=11 // pred_region
          _
        $region20: #{llama_forward.1} parent=11 // pred_fallthru
          _
        // Predicated region
        $region21: #{llama_forward.1} parent=11 // pred_check
          %p347 = pneg %p111
        $region22: #{llama_forward.1} parent=11 // pred_check_branch
          %349 = sbr.rel (%p347) target = $region24
        $region23: #{llama_forward.1} parent=11 // pred_region
          _
        $region24: #{llama_forward.1} parent=11 // pred_fallthru
          _
        // Predicated region
        $region25: #{llama_forward.1} parent=11 // pred_check
          %p350 = pneg %p132
        $region26: #{llama_forward.1} parent=11 // pred_check_branch
          %352 = sbr.rel (%p350) target = $region28
        $region27: #{llama_forward.1} parent=11 // pred_region
          _
        $region28: #{llama_forward.1} parent=11 // pred_fallthru
          _
        // Predicated region
        $region29: #{llama_forward.1} parent=11 // pred_check
          %p353 = pneg %p153
        $region30: #{llama_forward.1} parent=11 // pred_check_branch
          %355 = sbr.rel (%p353) target = $region32
        $region31: #{llama_forward.1} parent=11 // pred_region
          _
        $region32: #{llama_forward.1} parent=11 // pred_fallthru
          _
        // Predicated region
        $region33: #{llama_forward.1} parent=11 // pred_check
          %p356 = pneg %p174
        $region34: #{llama_forward.1} parent=11 // pred_check_branch
          %358 = sbr.rel (%p356) target = $region36
        $region35: #{llama_forward.1} parent=11 // pred_region
          _
        $region36: #{llama_forward.1} parent=11 // pred_fallthru
          _
        // Predicated region
        $region37: #{llama_forward.1} parent=11 // pred_check
          %p359 = pneg %p195
        $region38: #{llama_forward.1} parent=11 // pred_check_branch
          %361 = sbr.rel (%p359) target = $region40
        $region39: #{llama_forward.1} parent=11 // pred_region
          _
        $region40: #{llama_forward.1} parent=11 // pred_fallthru
          _
        // Predicated region
        $region41: #{llama_forward.1} parent=11 // pred_check
          %p362 = pneg %p216
        $region42: #{llama_forward.1} parent=11 // pred_check_branch
          %364 = sbr.rel (%p362) target = $region44
        $region43: #{llama_forward.1} parent=11 // pred_region
          _
        $region44: #{llama_forward.1} parent=11 // pred_fallthru
          _
        // Predicated region
        $region45: #{llama_forward.1} parent=11 // pred_check
          %p365 = pneg %p237
        $region46: #{llama_forward.1} parent=11 // pred_check_branch
          %367 = sbr.rel (%p365) target = $region48
        $region47: #{llama_forward.1} parent=11 // pred_region
          _
        $region48: #{llama_forward.1} parent=11 // pred_fallthru
          _
        // Predicated region
        $region49: #{llama_forward.1} parent=11 // pred_check
          %p368 = pneg %p258
        $region50: #{llama_forward.1} parent=11 // pred_check_branch
          %370 = sbr.rel (%p368) target = $region52
        $region51: #{llama_forward.1} parent=11 // pred_region
          _
        $region52: #{llama_forward.1} parent=11 // pred_fallthru
          _
        // Predicated region
        $region53: #{llama_forward.1} parent=11 // pred_check
          %p371 = pneg %p279
        $region54: #{llama_forward.1} parent=11 // pred_check_branch
          %373 = sbr.rel (%p371) target = $region56
        $region55: #{llama_forward.1} parent=11 // pred_region
          _
        $region56: #{llama_forward.1} parent=11 // pred_fallthru
          _
        // Predicated region
        $region57: #{llama_forward.1} parent=11 // pred_check
          %p374 = pneg %p300
        $region58: #{llama_forward.1} parent=11 // pred_check_branch
          %376 = sbr.rel (%p374) target = $region60
        $region59: #{llama_forward.1} parent=11 // pred_region
          _
        $region60: #{llama_forward.1} parent=11 // pred_fallthru
          _
      $region12: #{llama_forward.1} parent=5 // pred_fallthru
        _
      %p377 = scmp.lt.s32.totalorder %s22, 2
      // Predicated region
      $region61: #{llama_forward.1} parent=5 // pred_check
        %p378 = pneg %p377
      $region62: #{llama_forward.1} parent=5 // pred_check_branch
        %380 = sbr.rel (%p378) target = $region64
      $region63: #{llama_forward.1} parent=5 // pred_region
        // Predicated region
        $region65: #{llama_forward.1} parent=63 // pred_check
          %p381 = pneg %p42
        $region66: #{llama_forward.1} parent=63 // pred_check_branch
          %383 = sbr.rel (%p381) target = $region68
        $region67: #{llama_forward.1} parent=63 // pred_region
          %p384 = scmp.lt.s32.totalorder %s22, 1
          %s385 = scalar_select %p384, %s22, 1
          %s386 = smul.addr %s385, 8
          %s387 = scalar_lea.vmem %s0, %s386
        $region68: #{llama_forward.1} parent=63 // pred_fallthru
          _
      $region64: #{llama_forward.1} parent=5 // pred_fallthru
        _
      %p388 = scmp.le.s32.totalorder 1, %s22
      %p389 = scmp.lt.s32.totalorder %s22, 3
      %p390 = pnand %p388, %p389
      %p391 = pneg %p390
      // Predicated region
      $region69: #{llama_forward.1} parent=5 // pred_check
        _
      $region70: #{llama_forward.1} parent=5 // pred_check_branch
        %393 = sbr.rel (%p390) target = $region72
      $region71: #{llama_forward.1} parent=5 // pred_region
        %s394 = ssub.s32 %s22, 1
        %p395 = scmp.lt.s32.totalorder %s27, 1
        %s396 = scalar_select %p395, %s27, 1
        %s397 = smul.addr %s396, 8
        %s398 = scalar_lea.vmem %s0, %s397
        %p399 = pneg %p48
        %p400 = pneg %p45
        %p401 = pneg %p69
        %p402 = pneg %p66
        %p403 = pneg %p90
        %p404 = pneg %p87
        %p405 = pneg %p111
        %p406 = pneg %p108
        %p407 = pneg %p132
        %p408 = pneg %p129
        %p409 = pneg %p153
        %p410 = pneg %p150
        %p411 = pneg %p174
        %p412 = pneg %p171
        %p413 = pneg %p195
        %p414 = pneg %p192
        %p415 = pneg %p216
        %p416 = pneg %p213
        %p417 = pneg %p237
        %p418 = pneg %p234
        %p419 = pneg %p258
        %p420 = pneg %p255
        %p421 = pneg %p279
        %p422 = pneg %p276
        %p423 = pneg %p300
        %p424 = pneg %p297
        %p425 = pneg %p326
        %p426 = pneg %p323
        %s427 = sand.u32 %s313, 1
        %s428 = scalar_lea.sflag [#allocation3], %s427
        %s429 = sand.u32 %s313, 1
        %s430 = smul.addr %s429, 16
        %s431 = scalar_lea.vmem [#allocation2], %s430
        %p432 = scmp.lt.s32.totalorder %s27, 1
        %s433 = scalar_select %p432, %s27, 1
        %s434 = smul.addr %s433, 8
        %s435 = scalar_lea.vmem %s0, %s434
        %v437 = vld [vmem:[%s435] sm:$0xff]
        %v438 = vld [vmem:[%s1] sm:$0xff]
        %v439 = vld [vmem:[%s2] sm:$0xff]
        %v440 = vlaneseq
        %v441 = vshrl.u32 %v440, 7
        %v442 = vlaneseq
        %v443 = vand.u32 %v442, 127
        %vm444 = vcmp.le.s32.totalorder %v443, %v441
        %v445 = vld [vmem:[%s3] sm:$0x1]
        %v446 = vmul.f32 %v437, %v437
        %vm447 = vcmask 523264
        %v448 = vsel %vm447, %v446, 0.0
        %449 = vadd.xlane.f32.xlu0 %v448
        %v450 = vpop.xlane.xlu0 %449
        %v451 = vrcp.pop 64.0
        %v452 = vmul.f32 64.0, %v451
        %v453 = vsub.f32 1.0, %v452
        %v454 = vmul.f32 %v451, %v453
        %v455 = vadd.f32 %v451, %v454
        %vm456 = vweird.f32 %v451
        %v457 = vsel %vm456, %v451, %v455
        %v458 = vmul.f32 %v450, %v457
        %v459 = vadd.f32 %v458, 1e-06
        %v460 = vrsqrt.pop %v459
        %v461 = vmul.f32 %v460, %v459
        %v462 = vmul.f32 %v461, %v460
        %v463 = vmul.f32 0.5, %v462
        %v464 = vsub.f32 1.5, %v463
        %v465 = vmul.f32 %v460, %v464
        %vm466 = vweird.f32 %v459
        %vm467 = vweird.f32 %v460
        %vm468 = vmor %vm466, %vm467
        %v469 = vsel %vm468, %v460, %v465
        %v470 = vmul.f32 %v437, %v469
        %v472 = vperm.slane %v445, 0
        %v474 = vmul.f32 %v470, %v472
        %v475 = vpack.c.bf16 %v474, %v474
        %v476 = vld [vmem:[%s4] sm:$0xf]
        %v477 = vld [vmem:[%s4 + $0x4] sm:$0xf]
        %v478 = vld [vmem:[%s4 + $0x8] sm:$0xf]
        %v479 = vld [vmem:[%s4 + $0xc] sm:$0xf]
        %v480 = vld [vmem:[%s4 + $0x10] sm:$0xf]
        %v481 = vld [vmem:[%s4 + $0x14] sm:$0xf]
        %v482 = vld [vmem:[%s4 + $0x18] sm:$0xf]
        %v483 = vld [vmem:[%s4 + $0x1c] sm:$0xf]
        %v492 = vunpack.c.l.b16 %v476
        %v493 = vunpack.c.l.b16 %v477
        %v494 = vunpack.c.l.b16 %v478
        %v495 = vunpack.c.l.b16 %v479
        %v496 = vunpack.c.l.b16 %v480
        %v497 = vunpack.c.l.b16 %v481
        %v498 = vunpack.c.l.b16 %v482
        %v499 = vunpack.c.l.b16 %v483
        %v500 = vpack.c.b16 %v493, %v492
        %v501 = vpack.c.b16 %v495, %v494
        %v502 = vpack.c.b16 %v497, %v496
        %v503 = vpack.c.b16 %v499, %v498
        %v509 = vsel %vm447, %v475, 0
        %511 = vmatpush.bf16.msra.mxu0 0
        %512 = vmatpush.bf16.msra.mxu0 0
        %513 = vmatpush.bf16.msra.mxu0 0
        %514 = vmatpush.bf16.msra.mxu0 0
        %515 = vmatpush.bf16.msra.mxu0 %v503
        %516 = vmatpush.bf16.msra.mxu0 %v502
        %517 = vmatpush.bf16.msra.mxu0 %v501
        %518 = vmatpush.bf16.msra.mxu0 %v500
        %519 = vmatmul.bf16.gmra.mxu0 %v509
        %v520 = vpop.f32.mrf.mxu0
        %v521 = vadd.f32 0.0, %v520
        %v522 = vpop.f32.mrf.mxu0
        %523 = vdwg.mxu0
        %v524 = vmul.f32 %v521, %v439
        %526 = vrot.lane.b32.xlu0 %v438, 8
        %v527 = vpop.permute.xlu0 %526
        %v529 = vmul.f32 %v521, %v527
        %531 = vrot.lane.b32.xlu0 %v529, 120
        %v532 = vpop.permute.xlu0 %531
        %v534 = vsub.f32 %v524, %v532
        %v535 = vmul.f32 %v521, %v438
        %537 = vrot.lane.b32.xlu0 %v439, 8
        %v538 = vpop.permute.xlu0 %537
        %v540 = vmul.f32 %v521, %v538
        %542 = vrot.lane.b32.xlu0 %v540, 120
        %v543 = vpop.permute.xlu0 %542
        %v545 = vadd.f32 %v535, %v543
        %546 = vrot.lane.b32.xlu0 %v439, 16
        %v547 = vpop.permute.xlu0 %546
        %v549 = vmul.f32 %v521, %v547
        %550 = vrot.lane.b32.xlu0 %v438, 24
        %v551 = vpop.permute.xlu0 %550
        %v553 = vmul.f32 %v521, %v551
        %555 = vrot.lane.b32.xlu0 %v553, 120
        %v556 = vpop.permute.xlu0 %555
        %v558 = vsub.f32 %v549, %v556
        %559 = vrot.lane.b32.xlu0 %v438, 16
        %v560 = vpop.permute.xlu0 %559
        %v562 = vmul.f32 %v521, %v560
        %563 = vrot.lane.b32.xlu0 %v439, 24
        %v564 = vpop.permute.xlu0 %563
        %v566 = vmul.f32 %v521, %v564
        %568 = vrot.lane.b32.xlu0 %v566, 120
        %v569 = vpop.permute.xlu0 %568
        %v571 = vadd.f32 %v562, %v569
        %572 = vrot.lane.b32.xlu0 %v439, 32
        %v573 = vpop.permute.xlu0 %572
        %v575 = vmul.f32 %v521, %v573
        %576 = vrot.lane.b32.xlu0 %v438, 40
        %v577 = vpop.permute.xlu0 %576
        %v579 = vmul.f32 %v521, %v577
        %581 = vrot.lane.b32.xlu0 %v579, 120
        %v582 = vpop.permute.xlu0 %581
        %v584 = vsub.f32 %v575, %v582
        %585 = vrot.lane.b32.xlu0 %v438, 32
        %v586 = vpop.permute.xlu0 %585
        %v588 = vmul.f32 %v521, %v586
        %589 = vrot.lane.b32.xlu0 %v439, 40
        %v590 = vpop.permute.xlu0 %589
        %v592 = vmul.f32 %v521, %v590
        %594 = vrot.lane.b32.xlu0 %v592, 120
        %v595 = vpop.permute.xlu0 %594
        %v597 = vadd.f32 %v588, %v595
        %598 = vrot.lane.b32.xlu0 %v439, 48
        %v599 = vpop.permute.xlu0 %598
        %v601 = vmul.f32 %v521, %v599
        %602 = vrot.lane.b32.xlu0 %v438, 56
        %v603 = vpop.permute.xlu0 %602
        %v605 = vmul.f32 %v521, %v603
        %607 = vrot.lane.b32.xlu0 %v605, 120
        %v608 = vpop.permute.xlu0 %607
        %v610 = vsub.f32 %v601, %v608
        %611 = vrot.lane.b32.xlu0 %v438, 48
        %v612 = vpop.permute.xlu0 %611
        %v614 = vmul.f32 %v521, %v612
        %615 = vrot.lane.b32.xlu0 %v439, 56
        %v616 = vpop.permute.xlu0 %615
        %v618 = vmul.f32 %v521, %v616
        %620 = vrot.lane.b32.xlu0 %v618, 120
        %v621 = vpop.permute.xlu0 %620
        %v623 = vadd.f32 %v614, %v621
        %625 = vrot.lane.b32.xlu0 %v545, 8
        %v626 = vpop.permute.xlu0 %625
        %629 = vrot.lane.b32.xlu0 %v571, 8
        %v630 = vpop.permute.xlu0 %629
        %633 = vrot.lane.b32.xlu0 %v597, 8
        %v634 = vpop.permute.xlu0 %633
        %637 = vrot.lane.b32.xlu0 %v623, 8
        %v638 = vpop.permute.xlu0 %637
        %vm640 = vcmask 64512
        %v641 = vsel %vm640, %v534, %v626
        %vm642 = vcmask 130048
        %v643 = vsel %vm642, %v641, %v558
        %vm644 = vcmask 195584
        %v645 = vsel %vm644, %v643, %v630
        %vm646 = vcmask 261120
        %v647 = vsel %vm646, %v645, %v584
        %vm648 = vcmask 326656
        %v649 = vsel %vm648, %v647, %v634
        %vm650 = vcmask 392192
        %v651 = vsel %vm650, %v649, %v610
        %vm652 = vcmask 457728
        %v653 = vsel %vm652, %v651, %v638
        %654 = vrot.lane.b32.xlu0 %v439, 64
        %v655 = vpop.permute.xlu0 %654
        %v657 = vmul.f32 %v521, %v655
        %658 = vrot.lane.b32.xlu0 %v438, 72
        %v659 = vpop.permute.xlu0 %658
        %v661 = vmul.f32 %v521, %v659
        %663 = vrot.lane.b32.xlu0 %v661, 120
        %v664 = vpop.permute.xlu0 %663
        %v666 = vsub.f32 %v657, %v664
        %667 = vrot.lane.b32.xlu0 %v438, 64
        %v668 = vpop.permute.xlu0 %667
        %v670 = vmul.f32 %v521, %v668
        %671 = vrot.lane.b32.xlu0 %v439, 72
        %v672 = vpop.permute.xlu0 %671
        %v674 = vmul.f32 %v521, %v672
        %676 = vrot.lane.b32.xlu0 %v674, 120
        %v677 = vpop.permute.xlu0 %676
        %v679 = vadd.f32 %v670, %v677
        %680 = vrot.lane.b32.xlu0 %v439, 80
        %v681 = vpop.permute.xlu0 %680
        %v683 = vmul.f32 %v521, %v681
        %684 = vrot.lane.b32.xlu0 %v438, 88
        %v685 = vpop.permute.xlu0 %684
        %v687 = vmul.f32 %v521, %v685
        %689 = vrot.lane.b32.xlu0 %v687, 120
        %v690 = vpop.permute.xlu0 %689
        %v692 = vsub.f32 %v683, %v690
        %693 = vrot.lane.b32.xlu0 %v438, 80
        %v694 = vpop.permute.xlu0 %693
        %v696 = vmul.f32 %v521, %v694
        %697 = vrot.lane.b32.xlu0 %v439, 88
        %v698 = vpop.permute.xlu0 %697
        %v700 = vmul.f32 %v521, %v698
        %702 = vrot.lane.b32.xlu0 %v700, 120
        %v703 = vpop.permute.xlu0 %702
        %v705 = vadd.f32 %v696, %v703
        %707 = vrot.lane.b32.xlu0 %v666, 64
        %v708 = vpop.permute.xlu0 %707
        %711 = vrot.lane.b32.xlu0 %v679, 72
        %v712 = vpop.permute.xlu0 %711
        %715 = vrot.lane.b32.xlu0 %v692, 64
        %v716 = vpop.permute.xlu0 %715
        %719 = vrot.lane.b32.xlu0 %v705, 72
        %v720 = vpop.permute.xlu0 %719
        %v722 = vsel %vm640, %v708, %v712
        %v723 = vsel %vm642, %v722, %v716
        %v724 = vsel %vm644, %v723, %v720
        %v725 = vpack.c.bf16 %v653, %v653
        %v726 = vpack.c.bf16 %v724, %v724
        %v727 = vpack.c.bf16 %v521, %v521
        %v729 = vsel %vm642, %v725, 0
        %v732 = vsel %vm642, %v726, 0
        %734 = vmatpush.bf16.xpose.msra.mxu0 0
        %735 = vmatpush.bf16.xpose.msra.mxu0 0
        %736 = vmatpush.bf16.xpose.msra.mxu0 0
        %737 = vmatpush.bf16.xpose.msra.mxu0 0
        %738 = vmatpush.bf16.xpose.msra.mxu0 0
        %739 = vmatpush.bf16.xpose.msra.mxu0 0
        %740 = vmatpush.bf16.xpose.msra.mxu0 0
        %741 = vmatpush.bf16.xpose.msra.mxu0 %v732
        %742 = vmatmul.bf16.gmra.mxu0 %v729
        %v743 = vpop.f32.mrf.mxu0
        %v744 = vadd.f32 0.0, %v743
        %v745 = vpop.f32.mrf.mxu0
        %746 = vdwg.mxu0
        %v747 = vmul.f32 %v744, 0.25
        %v748 = vsel %vm444, %v747, -1e+30
        %v749 = vsel %vm640, %v748, -inf
        %750 = vmax.xlane.f32.xlu0 %v749
        %v751 = vpop.xlane.xlu0 %750
        %v752 = vsub.f32 %v748, %v751
        %v753 = vmul.f32 %v752, 1.442695
        %v754 = vpow.pop %v753
        %v755 = vsel %vm640, %v754, 0.0
        %756 = vadd.xlane.f32.xlu0 %v755
        %v757 = vpop.xlane.xlu0 %756
        %v758 = vrcp.pop %v757
        %v759 = vmul.f32 %v754, %v758
        %v760 = vpack.c.bf16 %v759, %v759
        %v762 = vunpack.c.l.b16 %v727
        %v763 = vpack.c.b16 %v762, %v762
        %764 = vrot.lane.b32.xlu0 %v763, 32
        %v765 = vpop.permute.xlu0 %764
        %v767 = vsel %vm640, %v760, 0
        %vm769 = vcmask 1043456
        %v771 = vsel %vm769, %v765, 0
        %773 = vmatpush.bf16.msra.mxu0 0
        %774 = vmatpush.bf16.msra.mxu0 0
        %775 = vmatpush.bf16.msra.mxu0 0
        %776 = vmatpush.bf16.msra.mxu0 0
        %777 = vmatpush.bf16.msra.mxu0 0
        %778 = vmatpush.bf16.msra.mxu0 0
        %779 = vmatpush.bf16.msra.mxu0 0
        %780 = vmatpush.bf16.msra.mxu0 %v771
        %781 = vmatmul.bf16.gmra.mxu0 %v767
        %v782 = vpop.f32.mrf.mxu0
        %v783 = vadd.f32 0.0, %v782
        %v784 = vpop.f32.mrf.mxu0
        %785 = vdwg.mxu0
        %v787 = vunpack.c.l.b16 %v725
        %v788 = vpack.c.b16 %v787, %v787
        %789 = vrot.lane.b32.xlu0 %v788, 112
        %v790 = vpop.permute.xlu0 %789
        %v792 = vsel %vm642, %v790, 0
        %794 = vmatpush.bf16.xpose.msra.mxu0 0
        %795 = vmatpush.bf16.xpose.msra.mxu0 0
        %796 = vmatpush.bf16.xpose.msra.mxu0 0
        %797 = vmatpush.bf16.xpose.msra.mxu0 0
        %798 = vmatpush.bf16.xpose.msra.mxu0 0
        %799 = vmatpush.bf16.xpose.msra.mxu0 0
        %800 = vmatpush.bf16.xpose.msra.mxu0 0
        %801 = vmatpush.bf16.xpose.msra.mxu0 %v732
        %802 = vmatmul.bf16.gmra.mxu0 %v792
        %v803 = vpop.f32.mrf.mxu0
        %v804 = vadd.f32 0.0, %v803
        %v805 = vpop.f32.mrf.mxu0
        %806 = vdwg.mxu0
        %v807 = vmul.f32 %v804, 0.25
        %v808 = vsel %vm444, %v807, -1e+30
        %v809 = vsel %vm640, %v808, -inf
        %810 = vmax.xlane.f32.xlu0 %v809
        %v811 = vpop.xlane.xlu0 %810
        %v812 = vsub.f32 %v808, %v811
        %v813 = vmul.f32 %v812, 1.442695
        %v814 = vpow.pop %v813
        %v815 = vsel %vm640, %v814, 0.0
        %816 = vadd.xlane.f32.xlu0 %v815
        %v817 = vpop.xlane.xlu0 %816
        %v818 = vrcp.pop %v817
        %v819 = vmul.f32 %v814, %v818
        %v820 = vpack.c.bf16 %v819, %v819
        %v822 = vsel %vm640, %v820, 0
        %824 = vmatpush.bf16.msra.mxu0 0
        %825 = vmatpush.bf16.msra.mxu0 0
        %826 = vmatpush.bf16.msra.mxu0 0
        %827 = vmatpush.bf16.msra.mxu0 0
        %828 = vmatpush.bf16.msra.mxu0 0
        %829 = vmatpush.bf16.msra.mxu0 0
        %830 = vmatpush.bf16.msra.mxu0 0
        %831 = vmatpush.bf16.msra.mxu0 %v771
        %832 = vmatmul.bf16.gmra.mxu0 %v822
        %v833 = vpop.f32.mrf.mxu0
        %v834 = vadd.f32 0.0, %v833
        %v835 = vpop.f32.mrf.mxu0
        %836 = vdwg.mxu0
        %837 = vrot.lane.b32.xlu0 %v788, 96
        %v838 = vpop.permute.xlu0 %837
        %v840 = vunpack.c.l.b16 %v726
        %v841 = vpack.c.b16 %v840, %v840
        %842 = vrot.lane.b32.xlu0 %v841, 112
        %v843 = vpop.permute.xlu0 %842
        %v845 = vsel %vm642, %v838, 0
        %v848 = vsel %vm642, %v843, 0
        %850 = vmatpush.bf16.xpose.msra.mxu0 0
        %851 = vmatpush.bf16.xpose.msra.mxu0 0
        %852 = vmatpush.bf16.xpose.msra.mxu0 0
        %853 = vmatpush.bf16.xpose.msra.mxu0 0
        %854 = vmatpush.bf16.xpose.msra.mxu0 0
        %855 = vmatpush.bf16.xpose.msra.mxu0 0
        %856 = vmatpush.bf16.xpose.msra.mxu0 0
        %857 = vmatpush.bf16.xpose.msra.mxu0 %v848
        %858 = vmatmul.bf16.gmra.mxu0 %v845
        %v859 = vpop.f32.mrf.mxu0
        %v860 = vadd.f32 0.0, %v859
        %v861 = vpop.f32.mrf.mxu0
        %862 = vdwg.mxu0
        %v863 = vmul.f32 %v860, 0.25
        %v864 = vsel %vm444, %v863, -1e+30
        %v865 = vsel %vm640, %v864, -inf
        %866 = vmax.xlane.f32.xlu0 %v865
        %v867 = vpop.xlane.xlu0 %866
        %v868 = vsub.f32 %v864, %v867
        %v869 = vmul.f32 %v868, 1.442695
        %v870 = vpow.pop %v869
        %v871 = vsel %vm640, %v870, 0.0
        %872 = vadd.xlane.f32.xlu0 %v871
        %v873 = vpop.xlane.xlu0 %872
        %v874 = vrcp.pop %v873
        %v875 = vmul.f32 %v870, %v874
        %v876 = vpack.c.bf16 %v875, %v875
        %877 = vrot.lane.b32.xlu0 %v763, 16
        %v878 = vpop.permute.xlu0 %877
        %v880 = vsel %vm640, %v876, 0
        %v883 = vsel %vm769, %v878, 0
        %885 = vmatpush.bf16.msra.mxu0 0
        %886 = vmatpush.bf16.msra.mxu0 0
        %887 = vmatpush.bf16.msra.mxu0 0
        %888 = vmatpush.bf16.msra.mxu0 0
        %889 = vmatpush.bf16.msra.mxu0 0
        %890 = vmatpush.bf16.msra.mxu0 0
        %891 = vmatpush.bf16.msra.mxu0 0
        %892 = vmatpush.bf16.msra.mxu0 %v883
        %893 = vmatmul.bf16.gmra.mxu0 %v880
        %v894 = vpop.f32.mrf.mxu0
        %v895 = vadd.f32 0.0, %v894
        %v896 = vpop.f32.mrf.mxu0
        %897 = vdwg.mxu0
        %898 = vrot.lane.b32.xlu0 %v788, 80
        %v899 = vpop.permute.xlu0 %898
        %v901 = vsel %vm642, %v899, 0
        %903 = vmatpush.bf16.xpose.msra.mxu0 0
        %904 = vmatpush.bf16.xpose.msra.mxu0 0
        %905 = vmatpush.bf16.xpose.msra.mxu0 0
        %906 = vmatpush.bf16.xpose.msra.mxu0 0
        %907 = vmatpush.bf16.xpose.msra.mxu0 0
        %908 = vmatpush.bf16.xpose.msra.mxu0 0
        %909 = vmatpush.bf16.xpose.msra.mxu0 0
        %910 = vmatpush.bf16.xpose.msra.mxu0 %v848
        %911 = vmatmul.bf16.gmra.mxu0 %v901
        %v912 = vpop.f32.mrf.mxu0
        %v913 = vadd.f32 0.0, %v912
        %v914 = vpop.f32.mrf.mxu0
        %915 = vdwg.mxu0
        %v916 = vmul.f32 %v913, 0.25
        %v917 = vsel %vm444, %v916, -1e+30
        %v918 = vsel %vm640, %v917, -inf
        %919 = vmax.xlane.f32.xlu0 %v918
        %v920 = vpop.xlane.xlu0 %919
        %v921 = vsub.f32 %v917, %v920
        %v922 = vmul.f32 %v921, 1.442695
        %v923 = vpow.pop %v922
        %v924 = vsel %vm640, %v923, 0.0
        %925 = vadd.xlane.f32.xlu0 %v924
        %v926 = vpop.xlane.xlu0 %925
        %v927 = vrcp.pop %v926
        %v928 = vmul.f32 %v923, %v927
        %v929 = vpack.c.bf16 %v928, %v928
        %v931 = vsel %vm640, %v929, 0
        %933 = vmatpush.bf16.msra.mxu0 0
        %934 = vmatpush.bf16.msra.mxu0 0
        %935 = vmatpush.bf16.msra.mxu0 0
        %936 = vmatpush.bf16.msra.mxu0 0
        %937 = vmatpush.bf16.msra.mxu0 0
        %938 = vmatpush.bf16.msra.mxu0 0
        %939 = vmatpush.bf16.msra.mxu0 0
        %940 = vmatpush.bf16.msra.mxu0 %v883
        %941 = vmatmul.bf16.gmra.mxu0 %v931
        %v942 = vpop.f32.mrf.mxu0
        %v943 = vadd.f32 0.0, %v942
        %v944 = vpop.f32.mrf.mxu0
        %945 = vdwg.mxu0
        %947 = vrot.lane.b32.xlu0 %v834, 16
        %v948 = vpop.permute.xlu0 %947
        %951 = vrot.lane.b32.xlu0 %v895, 32
        %v952 = vpop.permute.xlu0 %951
        %955 = vrot.lane.b32.xlu0 %v943, 48
        %v956 = vpop.permute.xlu0 %955
        %v958 = vsel %vm642, %v783, %v948
        %v959 = vsel %vm646, %v958, %v952
        %v960 = vsel %vm650, %v959, %v956
        %v961 = vpack.c.bf16 %v960, %v960
        %v962 = vld [vmem:[%s5] sm:$0xf]
        %v963 = vld [vmem:[%s5 + $0x4] sm:$0xf]
        %v964 = vld [vmem:[%s5 + $0x8] sm:$0xf]
        %v965 = vld [vmem:[%s5 + $0xc] sm:$0xf]
        %v966 = vld [vmem:[%s5 + $0x10] sm:$0xf]
        %v967 = vld [vmem:[%s5 + $0x14] sm:$0xf]
        %v968 = vld [vmem:[%s5 + $0x18] sm:$0xf]
        %v969 = vld [vmem:[%s5 + $0x1c] sm:$0xf]
        %v978 = vunpack.c.l.b16 %v962
        %v979 = vunpack.c.l.b16 %v963
        %v980 = vunpack.c.l.b16 %v964
        %v981 = vunpack.c.l.b16 %v965
        %v982 = vunpack.c.l.b16 %v966
        %v983 = vunpack.c.l.b16 %v967
        %v984 = vunpack.c.l.b16 %v968
        %v985 = vunpack.c.l.b16 %v969
        %v986 = vpack.c.b16 %v979, %v978
        %v987 = vpack.c.b16 %v981, %v980
        %v988 = vpack.c.b16 %v983, %v982
        %v989 = vpack.c.b16 %v985, %v984
        %v995 = vsel %vm447, %v961, 0
        %997 = vmatpush.bf16.msra.mxu0 0
        %998 = vmatpush.bf16.msra.mxu0 0
        %999 = vmatpush.bf16.msra.mxu0 0
        %1000 = vmatpush.bf16.msra.mxu0 0
        %1001 = vmatpush.bf16.msra.mxu0 %v989
        %1002 = vmatpush.bf16.msra.mxu0 %v988
        %1003 = vmatpush.bf16.msra.mxu0 %v987
        %1004 = vmatpush.bf16.msra.mxu0 %v986
        %1005 = vmatmul.bf16.gmra.mxu0 %v995
        %v1006 = vpop.f32.mrf.mxu0
        %v1007 = vadd.f32 0.0, %v1006
        %v1008 = vpop.f32.mrf.mxu0
        %1009 = vdwg.mxu0
        %v1010 = vadd.f32 %v437, %v1007
        %v1011 = vld [vmem:[%s6] sm:$0x1]
        %v1012 = vmul.f32 %v1010, %v1010
        %v1013 = vsel %vm447, %v1012, 0.0
        %1014 = vadd.xlane.f32.xlu0 %v1013
        %v1015 = vpop.xlane.xlu0 %1014
        %v1016 = vmul.f32 %v1015, %v457
        %v1017 = vadd.f32 %v1016, 1e-06
        %v1018 = vrsqrt.pop %v1017
        %v1019 = vmul.f32 %v1018, %v1017
        %v1020 = vmul.f32 %v1019, %v1018
        %v1021 = vmul.f32 0.5, %v1020
        %v1022 = vsub.f32 1.5, %v1021
        %v1023 = vmul.f32 %v1018, %v1022
        %vm1024 = vweird.f32 %v1017
        %vm1025 = vweird.f32 %v1018
        %vm1026 = vmor %vm1024, %vm1025
        %v1027 = vsel %vm1026, %v1018, %v1023
        %v1028 = vmul.f32 %v1010, %v1027
        %v1030 = vperm.slane %v1011, 0
        %v1032 = vmul.f32 %v1028, %v1030
        %v1033 = vpack.c.bf16 %v1032, %v1032
        %v1034 = vld [vmem:[%s7] sm:$0xff]
        %v1035 = vld [vmem:[%s7 + $0x8] sm:$0xff]
        %v1036 = vld [vmem:[%s7 + $0x10] sm:$0xff]
        %v1037 = vld [vmem:[%s7 + $0x18] sm:$0xff]
        %v1038 = vld [vmem:[%s7 + $0x20] sm:$0xff]
        %v1039 = vld [vmem:[%s7 + $0x28] sm:$0xff]
        %v1040 = vld [vmem:[%s7 + $0x30] sm:$0xff]
        %v1041 = vld [vmem:[%s7 + $0x38] sm:$0xff]
        %v1042 = vld [vmem:[%s8] sm:$0x3]
        %v1044 = vperm.slane %v1042, 0
        %v1045 = vperm.slane %v1042, 1
        %v1056 = vunpack.c.l.b16 %v1034
        %v1057 = vunpack.c.h.b16 %v1034
        %v1058 = vunpack.c.l.b16 %v1035
        %v1059 = vunpack.c.h.b16 %v1035
        %v1060 = vunpack.c.l.b16 %v1036
        %v1061 = vunpack.c.h.b16 %v1036
        %v1062 = vunpack.c.l.b16 %v1037
        %v1063 = vunpack.c.h.b16 %v1037
        %v1064 = vunpack.c.l.b16 %v1038
        %v1065 = vunpack.c.h.b16 %v1038
        %v1066 = vunpack.c.l.b16 %v1039
        %v1067 = vunpack.c.h.b16 %v1039
        %v1068 = vunpack.c.l.b16 %v1040
        %v1069 = vunpack.c.h.b16 %v1040
        %v1070 = vunpack.c.l.b16 %v1041
        %v1071 = vunpack.c.h.b16 %v1041
        %v1072 = vpack.c.b16 %v1058, %v1056
        %v1073 = vpack.c.b16 %v1059, %v1057
        %v1074 = vpack.c.b16 %v1062, %v1060
        %v1075 = vpack.c.b16 %v1063, %v1061
        %v1076 = vpack.c.b16 %v1066, %v1064
        %v1077 = vpack.c.b16 %v1067, %v1065
        %v1078 = vpack.c.b16 %v1070, %v1068
        %v1079 = vpack.c.b16 %v1071, %v1069
        %v1089 = vsel %vm447, %v1033, 0
        %1091 = vmatpush.bf16.msra.mxu0 0
        %1092 = vmatpush.bf16.msra.mxu0 0
        %1093 = vmatpush.bf16.msra.mxu0 0
        %1094 = vmatpush.bf16.msra.mxu0 0
        %1095 = vmatpush.bf16.msra.mxu0 %v1078
        %1096 = vmatpush.bf16.msra.mxu0 %v1076
        %1097 = vmatpush.bf16.msra.mxu0 %v1074
        %1098 = vmatpush.bf16.msra.mxu0 %v1072
        %1099 = vmatmul.bf16.gmra.mxu0 %v1089
        %v1100 = vpop.f32.mrf.mxu0
        %v1101 = vadd.f32 %v1044, %v1100
        %v1102 = vpop.f32.mrf.mxu0
        %1103 = vdwg.mxu0
        %1104 = vmatpush.bf16.msra.mxu0 0
        %1105 = vmatpush.bf16.msra.mxu0 0
        %1106 = vmatpush.bf16.msra.mxu0 0
        %1107 = vmatpush.bf16.msra.mxu0 0
        %1108 = vmatpush.bf16.msra.mxu0 %v1079
        %1109 = vmatpush.bf16.msra.mxu0 %v1077
        %1110 = vmatpush.bf16.msra.mxu0 %v1075
        %1111 = vmatpush.bf16.msra.mxu0 %v1073
        %1112 = vmatmul.bf16.gmra.mxu0 %v1089
        %v1113 = vpop.f32.mrf.mxu0
        %v1114 = vadd.f32 %v1045, %v1113
        %v1115 = vpop.f32.mrf.mxu0
        %1116 = vdwg.mxu0
        %v1117 = vxor.u32 %v1101, 2147483648
        %v1118 = vmul.f32 %v1117, 1.442695
        %v1119 = vpow.pop %v1118
        %v1120 = vadd.f32 %v1119, 1.0
        %v1121 = vrcp.pop %v1120
        %v1122 = vmul.f32 %v1120, %v1121
        %v1123 = vsub.f32 1.0, %v1122
        %v1124 = vmul.f32 %v1121, %v1123
        %v1125 = vadd.f32 %v1121, %v1124
        %vm1126 = vweird.f32 %v1120
        %vm1127 = vweird.f32 %v1121
        %vm1128 = vmor %vm1126, %vm1127
        %v1129 = vsel %vm1128, %v1121, %v1125
        %v1130 = vand.u32 2147483647, %v1120
        %vm1131 = vcmp.eq.f32.partialorder %v1130, 8.507059e+37
        %v1132 = vand.u32 %v1120, 2147483648
        %v1133 = vor.u32 1.1754944e-38, %v1132
        %v1134 = vsel %vm1131, %v1133, %v1129
        %v1135 = vmul.f32 1.0, %v1134
        %v1136 = vmul.f32 %v1101, %v1135
        %v1137 = vmul.f32 %v1136, %v1114
        %v1138 = vpack.c.bf16 %v1137, %v1137
        %v1139 = vld [vmem:[%s9] sm:$0xf]
        %v1140 = vld [vmem:[%s9 + $0x4] sm:$0xf]
        %v1141 = vld [vmem:[%s9 + $0x8] sm:$0xf]
        %v1142 = vld [vmem:[%s9 + $0xc] sm:$0xf]
        %v1143 = vld [vmem:[%s9 + $0x10] sm:$0xf]
        %v1144 = vld [vmem:[%s9 + $0x14] sm:$0xf]
        %v1145 = vld [vmem:[%s9 + $0x18] sm:$0xf]
        %v1146 = vld [vmem:[%s9 + $0x1c] sm:$0xf]
        %v1147 = vld [vmem:[%s9 + $0x20] sm:$0xf]
        %v1148 = vld [vmem:[%s9 + $0x24] sm:$0xf]
        %v1149 = vld [vmem:[%s9 + $0x28] sm:$0xf]
        %v1150 = vld [vmem:[%s9 + $0x2c] sm:$0xf]
        %v1151 = vld [vmem:[%s9 + $0x30] sm:$0xf]
        %v1152 = vld [vmem:[%s9 + $0x34] sm:$0xf]
        %v1153 = vld [vmem:[%s9 + $0x38] sm:$0xf]
        %v1154 = vld [vmem:[%s9 + $0x3c] sm:$0xf]
        %v1155 = vld [vmem:[%s10] sm:$0x1]
        %v1157 = vperm.slane %v1155, 0
        %v1175 = vunpack.c.l.b16 %v1139
        %v1176 = vunpack.c.l.b16 %v1140
        %v1177 = vunpack.c.l.b16 %v1141
        %v1178 = vunpack.c.l.b16 %v1142
        %v1179 = vunpack.c.l.b16 %v1143
        %v1180 = vunpack.c.l.b16 %v1144
        %v1181 = vunpack.c.l.b16 %v1145
        %v1182 = vunpack.c.l.b16 %v1146
        %v1183 = vunpack.c.l.b16 %v1147
        %v1184 = vunpack.c.l.b16 %v1148
        %v1185 = vunpack.c.l.b16 %v1149
        %v1186 = vunpack.c.l.b16 %v1150
        %v1187 = vunpack.c.l.b16 %v1151
        %v1188 = vunpack.c.l.b16 %v1152
        %v1189 = vunpack.c.l.b16 %v1153
        %v1190 = vunpack.c.l.b16 %v1154
        %v1191 = vpack.c.b16 %v1176, %v1175
        %v1192 = vpack.c.b16 %v1178, %v1177
        %v1193 = vpack.c.b16 %v1180, %v1179
        %v1194 = vpack.c.b16 %v1182, %v1181
        %v1195 = vpack.c.b16 %v1184, %v1183
        %v1196 = vpack.c.b16 %v1186, %v1185
        %v1197 = vpack.c.b16 %v1188, %v1187
        %v1198 = vpack.c.b16 %v1190, %v1189
        %1207 = vmatpush.bf16.msra.mxu0 %v1198
        %1208 = vmatpush.bf16.msra.mxu0 %v1197
        %1209 = vmatpush.bf16.msra.mxu0 %v1196
        %1210 = vmatpush.bf16.msra.mxu0 %v1195
        %1211 = vmatpush.bf16.msra.mxu0 %v1194
        %1212 = vmatpush.bf16.msra.mxu0 %v1193
        %1213 = vmatpush.bf16.msra.mxu0 %v1192
        %1214 = vmatpush.bf16.msra.mxu0 %v1191
        %1215 = vmatmul.bf16.gmra.mxu0 %v1138
        %v1216 = vpop.f32.mrf.mxu0
        %v1217 = vadd.f32 %v1157, %v1216
        %v1218 = vpop.f32.mrf.mxu0
        %1219 = vdwg.mxu0
        %v1220 = vadd.f32 %v1010, %v1217
        %s1221 = scalar_lea.vmem %s3, 1
        %v1222 = vld [vmem:[%s1221] sm:$0x1]
        %v1223 = vmul.f32 %v1220, %v1220
        %v1224 = vsel %vm447, %v1223, 0.0
        %1225 = vadd.xlane.f32.xlu0 %v1224
        %v1226 = vpop.xlane.xlu0 %1225
        %v1227 = vmul.f32 %v1226, %v457
        %v1228 = vadd.f32 %v1227, 1e-06
        %v1229 = vrsqrt.pop %v1228
        %v1230 = vmul.f32 %v1229, %v1228
        %v1231 = vmul.f32 %v1230, %v1229
        %v1232 = vmul.f32 0.5, %v1231
        %v1233 = vsub.f32 1.5, %v1232
        %v1234 = vmul.f32 %v1229, %v1233
        %vm1235 = vweird.f32 %v1228
        %vm1236 = vweird.f32 %v1229
        %vm1237 = vmor %vm1235, %vm1236
        %v1238 = vsel %vm1237, %v1229, %v1234
        %v1239 = vmul.f32 %v1220, %v1238
        %v1241 = vperm.slane %v1222, 0
        %v1243 = vmul.f32 %v1239, %v1241
        %v1244 = vpack.c.bf16 %v1243, %v1243
        %s1245 = scalar_lea.vmem %s4, 32
        %v1246 = vld [vmem:[%s1245] sm:$0xf]
        %v1247 = vld [vmem:[%s1245 + $0x4] sm:$0xf]
        %v1248 = vld [vmem:[%s1245 + $0x8] sm:$0xf]
        %v1249 = vld [vmem:[%s1245 + $0xc] sm:$0xf]
        %v1250 = vld [vmem:[%s1245 + $0x10] sm:$0xf]
        %v1251 = vld [vmem:[%s1245 + $0x14] sm:$0xf]
        %v1252 = vld [vmem:[%s1245 + $0x18] sm:$0xf]
        %v1253 = vld [vmem:[%s1245 + $0x1c] sm:$0xf]
        %v1262 = vunpack.c.l.b16 %v1246
        %v1263 = vunpack.c.l.b16 %v1247
        %v1264 = vunpack.c.l.b16 %v1248
        %v1265 = vunpack.c.l.b16 %v1249
        %v1266 = vunpack.c.l.b16 %v1250
        %v1267 = vunpack.c.l.b16 %v1251
        %v1268 = vunpack.c.l.b16 %v1252
        %v1269 = vunpack.c.l.b16 %v1253
        %v1270 = vpack.c.b16 %v1263, %v1262
        %v1271 = vpack.c.b16 %v1265, %v1264
        %v1272 = vpack.c.b16 %v1267, %v1266
        %v1273 = vpack.c.b16 %v1269, %v1268
        %v1279 = vsel %vm447, %v1244, 0
        %1281 = vmatpush.bf16.msra.mxu0 0
        %1282 = vmatpush.bf16.msra.mxu0 0
        %1283 = vmatpush.bf16.msra.mxu0 0
        %1284 = vmatpush.bf16.msra.mxu0 0
        %1285 = vmatpush.bf16.msra.mxu0 %v1273
        %1286 = vmatpush.bf16.msra.mxu0 %v1272
        %1287 = vmatpush.bf16.msra.mxu0 %v1271
        %1288 = vmatpush.bf16.msra.mxu0 %v1270
        %1289 = vmatmul.bf16.gmra.mxu0 %v1279
        %v1290 = vpop.f32.mrf.mxu0
        %v1291 = vadd.f32 0.0, %v1290
        %v1292 = vpop.f32.mrf.mxu0
        %1293 = vdwg.mxu0
        %v1294 = vmul.f32 %v1291, %v439
        %v1295 = vmul.f32 %v1291, %v527
        %1297 = vrot.lane.b32.xlu0 %v1295, 120
        %v1298 = vpop.permute.xlu0 %1297
        %v1300 = vsub.f32 %v1294, %v1298
        %v1301 = vmul.f32 %v1291, %v438
        %v1302 = vmul.f32 %v1291, %v538
        %1304 = vrot.lane.b32.xlu0 %v1302, 120
        %v1305 = vpop.permute.xlu0 %1304
        %v1307 = vadd.f32 %v1301, %v1305
        %v1308 = vmul.f32 %v1291, %v547
        %v1309 = vmul.f32 %v1291, %v551
        %1311 = vrot.lane.b32.xlu0 %v1309, 120
        %v1312 = vpop.permute.xlu0 %1311
        %v1314 = vsub.f32 %v1308, %v1312
        %v1315 = vmul.f32 %v1291, %v560
        %v1316 = vmul.f32 %v1291, %v564
        %1318 = vrot.lane.b32.xlu0 %v1316, 120
        %v1319 = vpop.permute.xlu0 %1318
        %v1321 = vadd.f32 %v1315, %v1319
        %v1322 = vmul.f32 %v1291, %v573
        %v1323 = vmul.f32 %v1291, %v577
        %1325 = vrot.lane.b32.xlu0 %v1323, 120
        %v1326 = vpop.permute.xlu0 %1325
        %v1328 = vsub.f32 %v1322, %v1326
        %v1329 = vmul.f32 %v1291, %v586
        %v1330 = vmul.f32 %v1291, %v590
        %1332 = vrot.lane.b32.xlu0 %v1330, 120
        %v1333 = vpop.permute.xlu0 %1332
        %v1335 = vadd.f32 %v1329, %v1333
        %v1336 = vmul.f32 %v1291, %v599
        %v1337 = vmul.f32 %v1291, %v603
        %1339 = vrot.lane.b32.xlu0 %v1337, 120
        %v1340 = vpop.permute.xlu0 %1339
        %v1342 = vsub.f32 %v1336, %v1340
        %v1343 = vmul.f32 %v1291, %v612
        %v1344 = vmul.f32 %v1291, %v616
        %1346 = vrot.lane.b32.xlu0 %v1344, 120
        %v1347 = vpop.permute.xlu0 %1346
        %v1349 = vadd.f32 %v1343, %v1347
        %1351 = vrot.lane.b32.xlu0 %v1307, 8
        %v1352 = vpop.permute.xlu0 %1351
        %1355 = vrot.lane.b32.xlu0 %v1321, 8
        %v1356 = vpop.permute.xlu0 %1355
        %1359 = vrot.lane.b32.xlu0 %v1335, 8
        %v1360 = vpop.permute.xlu0 %1359
        %1363 = vrot.lane.b32.xlu0 %v1349, 8
        %v1364 = vpop.permute.xlu0 %1363
        %v1366 = vsel %vm640, %v1300, %v1352
        %v1367 = vsel %vm642, %v1366, %v1314
        %v1368 = vsel %vm644, %v1367, %v1356
        %v1369 = vsel %vm646, %v1368, %v1328
        %v1370 = vsel %vm648, %v1369, %v1360
        %v1371 = vsel %vm650, %v1370, %v1342
        %v1372 = vsel %vm652, %v1371, %v1364
        %v1373 = vmul.f32 %v1291, %v655
        %v1374 = vmul.f32 %v1291, %v659
        %1376 = vrot.lane.b32.xlu0 %v1374, 120
        %v1377 = vpop.permute.xlu0 %1376
        %v1379 = vsub.f32 %v1373, %v1377
        %v1380 = vmul.f32 %v1291, %v668
        %v1381 = vmul.f32 %v1291, %v672
        %1383 = vrot.lane.b32.xlu0 %v1381, 120
        %v1384 = vpop.permute.xlu0 %1383
        %v1386 = vadd.f32 %v1380, %v1384
        %v1387 = vmul.f32 %v1291, %v681
        %v1388 = vmul.f32 %v1291, %v685
        %1390 = vrot.lane.b32.xlu0 %v1388, 120
        %v1391 = vpop.permute.xlu0 %1390
        %v1393 = vsub.f32 %v1387, %v1391
        %v1394 = vmul.f32 %v1291, %v694
        %v1395 = vmul.f32 %v1291, %v698
        %1397 = vrot.lane.b32.xlu0 %v1395, 120
        %v1398 = vpop.permute.xlu0 %1397
        %v1400 = vadd.f32 %v1394, %v1398
        %1402 = vrot.lane.b32.xlu0 %v1379, 64
        %v1403 = vpop.permute.xlu0 %1402
        %1406 = vrot.lane.b32.xlu0 %v1386, 72
        %v1407 = vpop.permute.xlu0 %1406
        %1410 = vrot.lane.b32.xlu0 %v1393, 64
        %v1411 = vpop.permute.xlu0 %1410
        %1414 = vrot.lane.b32.xlu0 %v1400, 72
        %v1415 = vpop.permute.xlu0 %1414
        %v1417 = vsel %vm640, %v1403, %v1407
        %v1418 = vsel %vm642, %v1417, %v1411
        %v1419 = vsel %vm644, %v1418, %v1415
        %v1420 = vpack.c.bf16 %v1372, %v1372
        %v1421 = vpack.c.bf16 %v1419, %v1419
        %v1422 = vpack.c.bf16 %v1291, %v1291
        %v1424 = vsel %vm642, %v1420, 0
        %v1427 = vsel %vm642, %v1421, 0
        %1429 = vmatpush.bf16.xpose.msra.mxu0 0
        %1430 = vmatpush.bf16.xpose.msra.mxu0 0
        %1431 = vmatpush.bf16.xpose.msra.mxu0 0
        %1432 = vmatpush.bf16.xpose.msra.mxu0 0
        %1433 = vmatpush.bf16.xpose.msra.mxu0 0
        %1434 = vmatpush.bf16.xpose.msra.mxu0 0
        %1435 = vmatpush.bf16.xpose.msra.mxu0 0
        %1436 = vmatpush.bf16.xpose.msra.mxu0 %v1427
        %1437 = vmatmul.bf16.gmra.mxu0 %v1424
        %v1438 = vpop.f32.mrf.mxu0
        %v1439 = vadd.f32 0.0, %v1438
        %v1440 = vpop.f32.mrf.mxu0
        %1441 = vdwg.mxu0
        %v1442 = vmul.f32 %v1439, 0.25
        %v1443 = vsel %vm444, %v1442, -1e+30
        %v1444 = vsel %vm640, %v1443, -inf
        %1445 = vmax.xlane.f32.xlu0 %v1444
        %v1446 = vpop.xlane.xlu0 %1445
        %v1447 = vsub.f32 %v1443, %v1446
        %v1448 = vmul.f32 %v1447, 1.442695
        %v1449 = vpow.pop %v1448
        %v1450 = vsel %vm640, %v1449, 0.0
        %1451 = vadd.xlane.f32.xlu0 %v1450
        %v1452 = vpop.xlane.xlu0 %1451
        %v1453 = vrcp.pop %v1452
        %v1454 = vmul.f32 %v1449, %v1453
        %v1455 = vpack.c.bf16 %v1454, %v1454
        %v1457 = vunpack.c.l.b16 %v1422
        %v1458 = vpack.c.b16 %v1457, %v1457
        %1459 = vrot.lane.b32.xlu0 %v1458, 32
        %v1460 = vpop.permute.xlu0 %1459
        %v1462 = vsel %vm640, %v1455, 0
        %v1465 = vsel %vm769, %v1460, 0
        %1467 = vmatpush.bf16.msra.mxu0 0
        %1468 = vmatpush.bf16.msra.mxu0 0
        %1469 = vmatpush.bf16.msra.mxu0 0
        %1470 = vmatpush.bf16.msra.mxu0 0
        %1471 = vmatpush.bf16.msra.mxu0 0
        %1472 = vmatpush.bf16.msra.mxu0 0
        %1473 = vmatpush.bf16.msra.mxu0 0
        %1474 = vmatpush.bf16.msra.mxu0 %v1465
        %1475 = vmatmul.bf16.gmra.mxu0 %v1462
        %v1476 = vpop.f32.mrf.mxu0
        %v1477 = vadd.f32 0.0, %v1476
        %v1478 = vpop.f32.mrf.mxu0
        %1479 = vdwg.mxu0
        %v1481 = vunpack.c.l.b16 %v1420
        %v1482 = vpack.c.b16 %v1481, %v1481
        %1483 = vrot.lane.b32.xlu0 %v1482, 112
        %v1484 = vpop.permute.xlu0 %1483
        %v1486 = vsel %vm642, %v1484, 0
        %1488 = vmatpush.bf16.xpose.msra.mxu0 0
        %1489 = vmatpush.bf16.xpose.msra.mxu0 0
        %1490 = vmatpush.bf16.xpose.msra.mxu0 0
        %1491 = vmatpush.bf16.xpose.msra.mxu0 0
        %1492 = vmatpush.bf16.xpose.msra.mxu0 0
        %1493 = vmatpush.bf16.xpose.msra.mxu0 0
        %1494 = vmatpush.bf16.xpose.msra.mxu0 0
        %1495 = vmatpush.bf16.xpose.msra.mxu0 %v1427
        %1496 = vmatmul.bf16.gmra.mxu0 %v1486
        %v1497 = vpop.f32.mrf.mxu0
        %v1498 = vadd.f32 0.0, %v1497
        %v1499 = vpop.f32.mrf.mxu0
        %1500 = vdwg.mxu0
        %v1501 = vmul.f32 %v1498, 0.25
        %v1502 = vsel %vm444, %v1501, -1e+30
        %v1503 = vsel %vm640, %v1502, -inf
        %1504 = vmax.xlane.f32.xlu0 %v1503
        %v1505 = vpop.xlane.xlu0 %1504
        %v1506 = vsub.f32 %v1502, %v1505
        %v1507 = vmul.f32 %v1506, 1.442695
        %v1508 = vpow.pop %v1507
        %v1509 = vsel %vm640, %v1508, 0.0
        %1510 = vadd.xlane.f32.xlu0 %v1509
        %v1511 = vpop.xlane.xlu0 %1510
        %v1512 = vrcp.pop %v1511
        %v1513 = vmul.f32 %v1508, %v1512
        %v1514 = vpack.c.bf16 %v1513, %v1513
        %v1516 = vsel %vm640, %v1514, 0
        %1518 = vmatpush.bf16.msra.mxu0 0
        %1519 = vmatpush.bf16.msra.mxu0 0
        %1520 = vmatpush.bf16.msra.mxu0 0
        %1521 = vmatpush.bf16.msra.mxu0 0
        %1522 = vmatpush.bf16.msra.mxu0 0
        %1523 = vmatpush.bf16.msra.mxu0 0
        %1524 = vmatpush.bf16.msra.mxu0 0
        %1525 = vmatpush.bf16.msra.mxu0 %v1465
        %1526 = vmatmul.bf16.gmra.mxu0 %v1516
        %v1527 = vpop.f32.mrf.mxu0
        %v1528 = vadd.f32 0.0, %v1527
        %v1529 = vpop.f32.mrf.mxu0
        %1530 = vdwg.mxu0
        %1531 = vrot.lane.b32.xlu0 %v1482, 96
        %v1532 = vpop.permute.xlu0 %1531
        %v1534 = vunpack.c.l.b16 %v1421
        %v1535 = vpack.c.b16 %v1534, %v1534
        %1536 = vrot.lane.b32.xlu0 %v1535, 112
        %v1537 = vpop.permute.xlu0 %1536
        %v1539 = vsel %vm642, %v1532, 0
        %v1542 = vsel %vm642, %v1537, 0
        %1544 = vmatpush.bf16.xpose.msra.mxu0 0
        %1545 = vmatpush.bf16.xpose.msra.mxu0 0
        %1546 = vmatpush.bf16.xpose.msra.mxu0 0
        %1547 = vmatpush.bf16.xpose.msra.mxu0 0
        %1548 = vmatpush.bf16.xpose.msra.mxu0 0
        %1549 = vmatpush.bf16.xpose.msra.mxu0 0
        %1550 = vmatpush.bf16.xpose.msra.mxu0 0
        %1551 = vmatpush.bf16.xpose.msra.mxu0 %v1542
        %1552 = vmatmul.bf16.gmra.mxu0 %v1539
        %v1553 = vpop.f32.mrf.mxu0
        %v1554 = vadd.f32 0.0, %v1553
        %v1555 = vpop.f32.mrf.mxu0
        %1556 = vdwg.mxu0
        %v1557 = vmul.f32 %v1554, 0.25
        %v1558 = vsel %vm444, %v1557, -1e+30
        %v1559 = vsel %vm640, %v1558, -inf
        %1560 = vmax.xlane.f32.xlu0 %v1559
        %v1561 = vpop.xlane.xlu0 %1560
        %v1562 = vsub.f32 %v1558, %v1561
        %v1563 = vmul.f32 %v1562, 1.442695
        %v1564 = vpow.pop %v1563
        %v1565 = vsel %vm640, %v1564, 0.0
        %1566 = vadd.xlane.f32.xlu0 %v1565
        %v1567 = vpop.xlane.xlu0 %1566
        %v1568 = vrcp.pop %v1567
        %v1569 = vmul.f32 %v1564, %v1568
        %v1570 = vpack.c.bf16 %v1569, %v1569
        %1571 = vrot.lane.b32.xlu0 %v1458, 16
        %v1572 = vpop.permute.xlu0 %1571
        %v1574 = vsel %vm640, %v1570, 0
        %v1577 = vsel %vm769, %v1572, 0
        %1579 = vmatpush.bf16.msra.mxu0 0
        %1580 = vmatpush.bf16.msra.mxu0 0
        %1581 = vmatpush.bf16.msra.mxu0 0
        %1582 = vmatpush.bf16.msra.mxu0 0
        %1583 = vmatpush.bf16.msra.mxu0 0
        %1584 = vmatpush.bf16.msra.mxu0 0
        %1585 = vmatpush.bf16.msra.mxu0 0
        %1586 = vmatpush.bf16.msra.mxu0 %v1577
        %1587 = vmatmul.bf16.gmra.mxu0 %v1574
        %v1588 = vpop.f32.mrf.mxu0
        %v1589 = vadd.f32 0.0, %v1588
        %v1590 = vpop.f32.mrf.mxu0
        %1591 = vdwg.mxu0
        %1592 = vrot.lane.b32.xlu0 %v1482, 80
        %v1593 = vpop.permute.xlu0 %1592
        %v1595 = vsel %vm642, %v1593, 0
        %1597 = vmatpush.bf16.xpose.msra.mxu0 0
        %1598 = vmatpush.bf16.xpose.msra.mxu0 0
        %1599 = vmatpush.bf16.xpose.msra.mxu0 0
        %1600 = vmatpush.bf16.xpose.msra.mxu0 0
        %1601 = vmatpush.bf16.xpose.msra.mxu0 0
        %1602 = vmatpush.bf16.xpose.msra.mxu0 0
        %1603 = vmatpush.bf16.xpose.msra.mxu0 0
        %1604 = vmatpush.bf16.xpose.msra.mxu0 %v1542
        %1605 = vmatmul.bf16.gmra.mxu0 %v1595
        %v1606 = vpop.f32.mrf.mxu0
        %v1607 = vadd.f32 0.0, %v1606
        %v1608 = vpop.f32.mrf.mxu0
        %1609 = vdwg.mxu0
        %v1610 = vmul.f32 %v1607, 0.25
        %v1611 = vsel %vm444, %v1610, -1e+30
        %v1612 = vsel %vm640, %v1611, -inf
        %1613 = vmax.xlane.f32.xlu0 %v1612
        %v1614 = vpop.xlane.xlu0 %1613
        %v1615 = vsub.f32 %v1611, %v1614
        %v1616 = vmul.f32 %v1615, 1.442695
        %v1617 = vpow.pop %v1616
        %v1618 = vsel %vm640, %v1617, 0.0
        %1619 = vadd.xlane.f32.xlu0 %v1618
        %v1620 = vpop.xlane.xlu0 %1619
        %v1621 = vrcp.pop %v1620
        %v1622 = vmul.f32 %v1617, %v1621
        %v1623 = vpack.c.bf16 %v1622, %v1622
        %v1625 = vsel %vm640, %v1623, 0
        %1627 = vmatpush.bf16.msra.mxu0 0
        %1628 = vmatpush.bf16.msra.mxu0 0
        %1629 = vmatpush.bf16.msra.mxu0 0
        %1630 = vmatpush.bf16.msra.mxu0 0
        %1631 = vmatpush.bf16.msra.mxu0 0
        %1632 = vmatpush.bf16.msra.mxu0 0
        %1633 = vmatpush.bf16.msra.mxu0 0
        %1634 = vmatpush.bf16.msra.mxu0 %v1577
        %1635 = vmatmul.bf16.gmra.mxu0 %v1625
        %v1636 = vpop.f32.mrf.mxu0
        %v1637 = vadd.f32 0.0, %v1636
        %v1638 = vpop.f32.mrf.mxu0
        %1639 = vdwg.mxu0
        %1641 = vrot.lane.b32.xlu0 %v1528, 16
        %v1642 = vpop.permute.xlu0 %1641
        %1645 = vrot.lane.b32.xlu0 %v1589, 32
        %v1646 = vpop.permute.xlu0 %1645
        %1649 = vrot.lane.b32.xlu0 %v1637, 48
        %v1650 = vpop.permute.xlu0 %1649
        %v1652 = vsel %vm642, %v1477, %v1642
        %v1653 = vsel %vm646, %v1652, %v1646
        %v1654 = vsel %vm650, %v1653, %v1650
        %v1655 = vpack.c.bf16 %v1654, %v1654
        %s1656 = scalar_lea.vmem %s5, 32
        %v1657 = vld [vmem:[%s1656] sm:$0xf]
        %v1658 = vld [vmem:[%s1656 + $0x4] sm:$0xf]
        %v1659 = vld [vmem:[%s1656 + $0x8] sm:$0xf]
        %v1660 = vld [vmem:[%s1656 + $0xc] sm:$0xf]
        %v1661 = vld [vmem:[%s1656 + $0x10] sm:$0xf]
        %v1662 = vld [vmem:[%s1656 + $0x14] sm:$0xf]
        %v1663 = vld [vmem:[%s1656 + $0x18] sm:$0xf]
        %v1664 = vld [vmem:[%s1656 + $0x1c] sm:$0xf]
        %v1673 = vunpack.c.l.b16 %v1657
        %v1674 = vunpack.c.l.b16 %v1658
        %v1675 = vunpack.c.l.b16 %v1659
        %v1676 = vunpack.c.l.b16 %v1660
        %v1677 = vunpack.c.l.b16 %v1661
        %v1678 = vunpack.c.l.b16 %v1662
        %v1679 = vunpack.c.l.b16 %v1663
        %v1680 = vunpack.c.l.b16 %v1664
        %v1681 = vpack.c.b16 %v1674, %v1673
        %v1682 = vpack.c.b16 %v1676, %v1675
        %v1683 = vpack.c.b16 %v1678, %v1677
        %v1684 = vpack.c.b16 %v1680, %v1679
        %v1690 = vsel %vm447, %v1655, 0
        %1692 = vmatpush.bf16.msra.mxu0 0
        %1693 = vmatpush.bf16.msra.mxu0 0
        %1694 = vmatpush.bf16.msra.mxu0 0
        %1695 = vmatpush.bf16.msra.mxu0 0
        %1696 = vmatpush.bf16.msra.mxu0 %v1684
        %1697 = vmatpush.bf16.msra.mxu0 %v1683
        %1698 = vmatpush.bf16.msra.mxu0 %v1682
        %1699 = vmatpush.bf16.msra.mxu0 %v1681
        %1700 = vmatmul.bf16.gmra.mxu0 %v1690
        %v1701 = vpop.f32.mrf.mxu0
        %v1702 = vadd.f32 0.0, %v1701
        %v1703 = vpop.f32.mrf.mxu0
        %1704 = vdwg.mxu0
        %v1705 = vadd.f32 %v1220, %v1702
        %s1706 = scalar_lea.vmem %s6, 1
        %v1707 = vld [vmem:[%s1706] sm:$0x1]
        %v1708 = vmul.f32 %v1705, %v1705
        %v1709 = vsel %vm447, %v1708, 0.0
        %1710 = vadd.xlane.f32.xlu0 %v1709
        %v1711 = vpop.xlane.xlu0 %1710
        %v1712 = vmul.f32 %v1711, %v457
        %v1713 = vadd.f32 %v1712, 1e-06
        %v1714 = vrsqrt.pop %v1713
        %v1715 = vmul.f32 %v1714, %v1713
        %v1716 = vmul.f32 %v1715, %v1714
        %v1717 = vmul.f32 0.5, %v1716
        %v1718 = vsub.f32 1.5, %v1717
        %v1719 = vmul.f32 %v1714, %v1718
        %vm1720 = vweird.f32 %v1713
        %vm1721 = vweird.f32 %v1714
        %vm1722 = vmor %vm1720, %vm1721
        %v1723 = vsel %vm1722, %v1714, %v1719
        %v1724 = vmul.f32 %v1705, %v1723
        %v1726 = vperm.slane %v1707, 0
        %v1728 = vmul.f32 %v1724, %v1726
        %v1729 = vpack.c.bf16 %v1728, %v1728
        %s1730 = scalar_lea.vmem %s7, 64
        %v1731 = vld [vmem:[%s1730] sm:$0xff]
        %v1732 = vld [vmem:[%s1730 + $0x8] sm:$0xff]
        %v1733 = vld [vmem:[%s1730 + $0x10] sm:$0xff]
        %v1734 = vld [vmem:[%s1730 + $0x18] sm:$0xff]
        %v1735 = vld [vmem:[%s1730 + $0x20] sm:$0xff]
        %v1736 = vld [vmem:[%s1730 + $0x28] sm:$0xff]
        %v1737 = vld [vmem:[%s1730 + $0x30] sm:$0xff]
        %v1738 = vld [vmem:[%s1730 + $0x38] sm:$0xff]
        %s1739 = scalar_lea.vmem %s8, 2
        %v1740 = vld [vmem:[%s1739] sm:$0x3]
        %v1742 = vperm.slane %v1740, 0
        %v1743 = vperm.slane %v1740, 1
        %v1754 = vunpack.c.l.b16 %v1731
        %v1755 = vunpack.c.h.b16 %v1731
        %v1756 = vunpack.c.l.b16 %v1732
        %v1757 = vunpack.c.h.b16 %v1732
        %v1758 = vunpack.c.l.b16 %v1733
        %v1759 = vunpack.c.h.b16 %v1733
        %v1760 = vunpack.c.l.b16 %v1734
        %v1761 = vunpack.c.h.b16 %v1734
        %v1762 = vunpack.c.l.b16 %v1735
        %v1763 = vunpack.c.h.b16 %v1735
        %v1764 = vunpack.c.l.b16 %v1736
        %v1765 = vunpack.c.h.b16 %v1736
        %v1766 = vunpack.c.l.b16 %v1737
        %v1767 = vunpack.c.h.b16 %v1737
        %v1768 = vunpack.c.l.b16 %v1738
        %v1769 = vunpack.c.h.b16 %v1738
        %v1770 = vpack.c.b16 %v1756, %v1754
        %v1771 = vpack.c.b16 %v1757, %v1755
        %v1772 = vpack.c.b16 %v1760, %v1758
        %v1773 = vpack.c.b16 %v1761, %v1759
        %v1774 = vpack.c.b16 %v1764, %v1762
        %v1775 = vpack.c.b16 %v1765, %v1763
        %v1776 = vpack.c.b16 %v1768, %v1766
        %v1777 = vpack.c.b16 %v1769, %v1767
        %v1787 = vsel %vm447, %v1729, 0
        %1789 = vmatpush.bf16.msra.mxu0 0
        %1790 = vmatpush.bf16.msra.mxu0 0
        %1791 = vmatpush.bf16.msra.mxu0 0
        %1792 = vmatpush.bf16.msra.mxu0 0
        %1793 = vmatpush.bf16.msra.mxu0 %v1776
        %1794 = vmatpush.bf16.msra.mxu0 %v1774
        %1795 = vmatpush.bf16.msra.mxu0 %v1772
        %1796 = vmatpush.bf16.msra.mxu0 %v1770
        %1797 = vmatmul.bf16.gmra.mxu0 %v1787
        %v1798 = vpop.f32.mrf.mxu0
        %v1799 = vadd.f32 %v1742, %v1798
        %v1800 = vpop.f32.mrf.mxu0
        %1801 = vdwg.mxu0
        %1802 = vmatpush.bf16.msra.mxu0 0
        %1803 = vmatpush.bf16.msra.mxu0 0
        %1804 = vmatpush.bf16.msra.mxu0 0
        %1805 = vmatpush.bf16.msra.mxu0 0
        %1806 = vmatpush.bf16.msra.mxu0 %v1777
        %1807 = vmatpush.bf16.msra.mxu0 %v1775
        %1808 = vmatpush.bf16.msra.mxu0 %v1773
        %1809 = vmatpush.bf16.msra.mxu0 %v1771
        %1810 = vmatmul.bf16.gmra.mxu0 %v1787
        %v1811 = vpop.f32.mrf.mxu0
        %v1812 = vadd.f32 %v1743, %v1811
        %v1813 = vpop.f32.mrf.mxu0
        %1814 = vdwg.mxu0
        %v1815 = vxor.u32 %v1799, 2147483648
        %v1816 = vmul.f32 %v1815, 1.442695
        %v1817 = vpow.pop %v1816
        %v1818 = vadd.f32 %v1817, 1.0
        %v1819 = vrcp.pop %v1818
        %v1820 = vmul.f32 %v1818, %v1819
        %v1821 = vsub.f32 1.0, %v1820
        %v1822 = vmul.f32 %v1819, %v1821
        %v1823 = vadd.f32 %v1819, %v1822
        %vm1824 = vweird.f32 %v1818
        %vm1825 = vweird.f32 %v1819
        %vm1826 = vmor %vm1824, %vm1825
        %v1827 = vsel %vm1826, %v1819, %v1823
        %v1828 = vand.u32 2147483647, %v1818
        %vm1829 = vcmp.eq.f32.partialorder %v1828, 8.507059e+37
        %v1830 = vand.u32 %v1818, 2147483648
        %v1831 = vor.u32 1.1754944e-38, %v1830
        %v1832 = vsel %vm1829, %v1831, %v1827
        %v1833 = vmul.f32 1.0, %v1832
        %v1834 = vmul.f32 %v1799, %v1833
        %v1835 = vmul.f32 %v1834, %v1812
        %v1836 = vpack.c.bf16 %v1835, %v1835
        %s1837 = scalar_lea.vmem %s9, 64
        %v1838 = vld [vmem:[%s1837] sm:$0xf]
        %v1839 = vld [vmem:[%s1837 + $0x4] sm:$0xf]
        %v1840 = vld [vmem:[%s1837 + $0x8] sm:$0xf]
        %v1841 = vld [vmem:[%s1837 + $0xc] sm:$0xf]
        %v1842 = vld [vmem:[%s1837 + $0x10] sm:$0xf]
        %v1843 = vld [vmem:[%s1837 + $0x14] sm:$0xf]
        %v1844 = vld [vmem:[%s1837 + $0x18] sm:$0xf]
        %v1845 = vld [vmem:[%s1837 + $0x1c] sm:$0xf]
        %v1846 = vld [vmem:[%s1837 + $0x20] sm:$0xf]
        %v1847 = vld [vmem:[%s1837 + $0x24] sm:$0xf]
        %v1848 = vld [vmem:[%s1837 + $0x28] sm:$0xf]
        %v1849 = vld [vmem:[%s1837 + $0x2c] sm:$0xf]
        %v1850 = vld [vmem:[%s1837 + $0x30] sm:$0xf]
        %v1851 = vld [vmem:[%s1837 + $0x34] sm:$0xf]
        %v1852 = vld [vmem:[%s1837 + $0x38] sm:$0xf]
        %v1853 = vld [vmem:[%s1837 + $0x3c] sm:$0xf]
        %s1854 = scalar_lea.vmem %s10, 1
        %v1855 = vld [vmem:[%s1854] sm:$0x1]
        %v1857 = vperm.slane %v1855, 0
        %v1875 = vunpack.c.l.b16 %v1838
        %v1876 = vunpack.c.l.b16 %v1839
        %v1877 = vunpack.c.l.b16 %v1840
        %v1878 = vunpack.c.l.b16 %v1841
        %v1879 = vunpack.c.l.b16 %v1842
        %v1880 = vunpack.c.l.b16 %v1843
        %v1881 = vunpack.c.l.b16 %v1844
        %v1882 = vunpack.c.l.b16 %v1845
        %v1883 = vunpack.c.l.b16 %v1846
        %v1884 = vunpack.c.l.b16 %v1847
        %v1885 = vunpack.c.l.b16 %v1848
        %v1886 = vunpack.c.l.b16 %v1849
        %v1887 = vunpack.c.l.b16 %v1850
        %v1888 = vunpack.c.l.b16 %v1851
        %v1889 = vunpack.c.l.b16 %v1852
        %v1890 = vunpack.c.l.b16 %v1853
        %v1891 = vpack.c.b16 %v1876, %v1875
        %v1892 = vpack.c.b16 %v1878, %v1877
        %v1893 = vpack.c.b16 %v1880, %v1879
        %v1894 = vpack.c.b16 %v1882, %v1881
        %v1895 = vpack.c.b16 %v1884, %v1883
        %v1896 = vpack.c.b16 %v1886, %v1885
        %v1897 = vpack.c.b16 %v1888, %v1887
        %v1898 = vpack.c.b16 %v1890, %v1889
        %1907 = vmatpush.bf16.msra.mxu0 %v1898
        %1908 = vmatpush.bf16.msra.mxu0 %v1897
        %1909 = vmatpush.bf16.msra.mxu0 %v1896
        %1910 = vmatpush.bf16.msra.mxu0 %v1895
        %1911 = vmatpush.bf16.msra.mxu0 %v1894
        %1912 = vmatpush.bf16.msra.mxu0 %v1893
        %1913 = vmatpush.bf16.msra.mxu0 %v1892
        %1914 = vmatpush.bf16.msra.mxu0 %v1891
        %1915 = vmatmul.bf16.gmra.mxu0 %v1836
        %v1916 = vpop.f32.mrf.mxu0
        %v1917 = vadd.f32 %v1857, %v1916
        %v1918 = vpop.f32.mrf.mxu0
        %1919 = vdwg.mxu0
        %v1920 = vadd.f32 %v1705, %v1917
        %v1921 = vld [vmem:[%s11] sm:$0x1]
        %v1922 = vmul.f32 %v1920, %v1920
        %v1923 = vsel %vm447, %v1922, 0.0
        %1924 = vadd.xlane.f32.xlu0 %v1923
        %v1925 = vpop.xlane.xlu0 %1924
        %v1926 = vmul.f32 %v1925, %v457
        %v1927 = vadd.f32 %v1926, 1e-06
        %v1928 = vrsqrt.pop %v1927
        %v1929 = vmul.f32 %v1928, %v1927
        %v1930 = vmul.f32 %v1929, %v1928
        %v1931 = vmul.f32 0.5, %v1930
        %v1932 = vsub.f32 1.5, %v1931
        %v1933 = vmul.f32 %v1928, %v1932
        %vm1934 = vweird.f32 %v1927
        %vm1935 = vweird.f32 %v1928
        %vm1936 = vmor %vm1934, %vm1935
        %v1937 = vsel %vm1936, %v1928, %v1933
        %v1938 = vmul.f32 %v1920, %v1937
        %v1940 = vperm.slane %v1921, 0
        %v1942 = vmul.f32 %v1938, %v1940
        %v1943 = vpack.c.bf16 %v1942, %v1942
        %v1944 = vld [vmem:[%s12] sm:$0xff]
        %v1945 = vld [vmem:[%s12 + $0x8] sm:$0xff]
        %v1946 = vld [vmem:[%s12 + $0x10] sm:$0xff]
        %v1947 = vld [vmem:[%s12 + $0x18] sm:$0xff]
        %v1948 = vld [vmem:[%s12 + $0x20] sm:$0xff]
        %v1949 = vld [vmem:[%s12 + $0x28] sm:$0xff]
        %v1950 = vld [vmem:[%s12 + $0x30] sm:$0xff]
        %v1951 = vld [vmem:[%s12 + $0x38] sm:$0xff]
        %v1960 = vunpack.c.l.b16 %v1944
        %v1961 = vunpack.c.h.b16 %v1944
        %v1962 = vunpack.c.l.b16 %v1945
        %v1963 = vunpack.c.h.b16 %v1945
        %v1964 = vunpack.c.l.b16 %v1946
        %v1965 = vunpack.c.h.b16 %v1946
        %v1966 = vunpack.c.l.b16 %v1947
        %v1967 = vunpack.c.h.b16 %v1947
        %v1968 = vunpack.c.l.b16 %v1948
        %v1969 = vunpack.c.h.b16 %v1948
        %v1970 = vunpack.c.l.b16 %v1949
        %v1971 = vunpack.c.h.b16 %v1949
        %v1972 = vunpack.c.l.b16 %v1950
        %v1973 = vunpack.c.h.b16 %v1950
        %v1974 = vunpack.c.l.b16 %v1951
        %v1975 = vunpack.c.h.b16 %v1951
        %v1976 = vpack.c.b16 %v1962, %v1960
        %v1977 = vpack.c.b16 %v1963, %v1961
        %v1978 = vpack.c.b16 %v1966, %v1964
        %v1979 = vpack.c.b16 %v1967, %v1965
        %v1980 = vpack.c.b16 %v1970, %v1968
        %v1981 = vpack.c.b16 %v1971, %v1969
        %v1982 = vpack.c.b16 %v1974, %v1972
        %v1983 = vpack.c.b16 %v1975, %v1973
        %v1993 = vsel %vm447, %v1943, 0
        %1995 = vmatpush.bf16.msra.mxu0 0
        %1996 = vmatpush.bf16.msra.mxu0 0
        %1997 = vmatpush.bf16.msra.mxu0 0
        %1998 = vmatpush.bf16.msra.mxu0 0
        %1999 = vmatpush.bf16.msra.mxu0 %v1982
        %2000 = vmatpush.bf16.msra.mxu0 %v1980
        %2001 = vmatpush.bf16.msra.mxu0 %v1978
        %2002 = vmatpush.bf16.msra.mxu0 %v1976
        %2003 = vmatmul.bf16.gmra.mxu0 %v1993
        %v2004 = vpop.f32.mrf.mxu0
        %v2005 = vadd.f32 0.0, %v2004
        %v2006 = vpop.f32.mrf.mxu0
        %2007 = vdwg.mxu0
        %2008 = vmatpush.bf16.msra.mxu0 0
        %2009 = vmatpush.bf16.msra.mxu0 0
        %2010 = vmatpush.bf16.msra.mxu0 0
        %2011 = vmatpush.bf16.msra.mxu0 0
        %2012 = vmatpush.bf16.msra.mxu0 %v1983
        %2013 = vmatpush.bf16.msra.mxu0 %v1981
        %2014 = vmatpush.bf16.msra.mxu0 %v1979
        %2015 = vmatpush.bf16.msra.mxu0 %v1977
        %2016 = vmatmul.bf16.gmra.mxu0 %v1993
        %v2017 = vpop.f32.mrf.mxu0
        %v2018 = vadd.f32 0.0, %v2017
        %v2019 = vpop.f32.mrf.mxu0
        %2020 = vdwg.mxu0
        %2021 = vst [vmem:[%s431] sm:$0xff] %v2005
        %2022 = vst [vmem:[%s431 + $0x8] sm:$0xff] %v2018
        %s2023 = sand.u32 %s313, 1
        %s2024 = scalar_lea.sflag [#allocation3], %s2023
        %s2025 = sand.u32 %s313, 1
        %s2026 = smul.addr %s2025, 16
        %s2027 = scalar_lea.vmem [#allocation2], %s2026
        // Predicated region
        $region73: #{llama_forward.1} parent=71 // pred_check
          %p2028 = pneg %p323
        $region74: #{llama_forward.1} parent=71 // pred_check_branch
          %2030 = sbr.rel (%p2028) target = $region76
        $region75: #{llama_forward.1} parent=71 // pred_region
          %2032 = vsyncadd %s2024, 0
          %s2033 = smul.addr %s27, 2
          %s2034 = smul.addr %s2033, 8
          %s2035 = scalar_lea.hbm %s13, %s2034
          %s2037 = sshll.u32 %s2027, 4
          %s2038 = int_to_ptr.vmem [resolvable:$true] %s2037
          %s2039 = sshll.u32 %s2035, 4
          %s2040 = int_to_ptr.hbm [resolvable:$true] %s2039
          %2042 = dma.vmem_to_hbm [thread:$0]  %s2038, 256, %s2040, %s2024
        $region76: #{llama_forward.1} parent=71 // pred_fallthru
          _
      $region72: #{llama_forward.1} parent=5 // pred_fallthru
        _
      %p2043 = scmp.le.s32.totalorder 2, %s22
      // Predicated region
      $region77: #{llama_forward.1} parent=5 // pred_check
        %p2044 = pneg %p2043
      $region78: #{llama_forward.1} parent=5 // pred_check_branch
        %2046 = sbr.rel (%p2044) target = $region80
      $region79: #{llama_forward.1} parent=5 // pred_region
        %s2047 = ssub.s32 %s22, 2
        // Predicated region
        $region81: #{llama_forward.1} parent=79 // pred_check
          %p2048 = pneg %p329
        $region82: #{llama_forward.1} parent=79 // pred_check_branch
          %2050 = sbr.rel (%p2048) target = $region84
        $region83: #{llama_forward.1} parent=79 // pred_region
          %s2051 = sand.u32 %s314, 1
          %s2052 = scalar_lea.sflag [#allocation3], %s2051
          %s2053 = sand.u32 %s314, 1
          %s2054 = smul.addr %s2053, 16
          %s2055 = scalar_lea.vmem [#allocation2], %s2054
          %2057 = dma.done %s2052, 256
        $region84: #{llama_forward.1} parent=79 // pred_fallthru
          _
      $region80: #{llama_forward.1} parent=5 // pred_fallthru
        _
    $region6: #{llama_forward.1} parent=1 // loop_footer
      %s26 = sadd.s32 1, %s22
    $region7: #{llama_forward.1} parent=1 // loop_footer_branch
      %21 = sbr.rel target = $region3
    $region8: #{llama_forward.1} parent=1 // loop_exit
      _
    %2058 = vsyncpa [#allocation3], 1
    %s2059 = scalar_lea.sflag [#allocation3], 1
    %2060 = vsyncpa %s2059, 1

</llo_original>
